<compile_context>
chip_gen: v7x
topology: tpu7x:2x2x1
jax: 0.10.0
libtpu: 0.0.40
codegen_flags: <defaults>
</compile_context>

<pallas_src>
import functools

import jax
import jax.numpy as jnp
from jax import lax
from jax.experimental import pallas as pl
from jax.experimental.pallas import tpu as pltpu


def _reflect_pad_hw(x, pad):
    """Reflection-pad the last two dims of a (Cin, H, W) value by `pad` (PyTorch
    ReflectionPad2d semantics). Built from static slices + concatenate only."""
    if pad == 0:
        return x
    _, H, W = x.shape
    # Columns: padded col c (c<pad) <- src col (pad-c); right side mirrors W-2, W-3, ...
    left = [x[:, :, pad - c:pad - c + 1] for c in range(pad)]
    right = [x[:, :, W - 2 - j:W - 1 - j] for j in range(pad)]
    xw = jnp.concatenate(left + [x] + right, axis=2)          # (Cin, H, Wp)
    # Rows: same reflection on the already column-padded plane.
    top = [xw[:, pad - r:pad - r + 1, :] for r in range(pad)]
    bot = [xw[:, H - 2 - j:H - 1 - j, :] for j in range(pad)]
    return jnp.concatenate(top + [xw] + bot, axis=1)           # (Cin, Hp, Wp)


def _f_conv_kernel(x_ref, w_ref, b_ref, o_ref,
                   *, K, stride, pad, H, W, Hout, Wout):
    """One batch element: reflection-pad -> conv2d -> bias -> leaky_relu(0.1).

    x_ref : (1, Cin, H, W)            unpadded input block (NCHW)
    w_ref : (K*K, Cout, Cin)          weights, tap-major
    b_ref : (Cout, 1)                 bias
    o_ref : (1, Cout, Hout*Wout)      output, lane-dense last dim
    """
    Cin = x_ref.shape[1]
    Cout = o_ref.shape[1]
    Hp, Wp = H + 2 * pad, W + 2 * pad

    x = x_ref[0].astype(jnp.float32)                           # (Cin, H, W)
    xp = _reflect_pad_hw(x, pad)                               # (Cin, Hp, Wp)

    if stride == 1:
        # Fast path: flatten once (+1 zero halo row so every tap slice stays in
        # bounds); each tap is a contiguous lane slice -> one MXU matmul per tap.
        xflat = jnp.concatenate(
            [xp, jnp.zeros((Cin, 1, Wp), jnp.float32)], axis=1
        ).reshape(Cin, (Hp + 1) * Wp)
        L = Hout * Wp
        acc = jnp.zeros((Cout, L), jnp.float32)
        for kh in range(K):
            for kw in range(K):
                start = kh * Wp + kw
                patch = lax.slice(xflat, (0, start), (Cin, start + L))
                acc = acc + jnp.dot(w_ref[kh * K + kw], patch,
                                    preferred_element_type=jnp.float32)
        # Drop the K-1 junk columns per output row once, at the end.
        y = acc.reshape(Cout, Hout, Wp)[:, :, :Wout].reshape(Cout, Hout * Wout)
    else:
        # General stride path: strided 3-D slice per tap.
        acc = jnp.zeros((Cout, Hout * Wout), jnp.float32)
        for kh in range(K):
            for kw in range(K):
                patch = lax.slice(
                    xp, (0, kh, kw),
                    (Cin,
                     kh + (Hout - 1) * stride + 1,
                     kw + (Wout - 1) * stride + 1),
                    (1, stride, stride))                       # (Cin, Hout, Wout)
                acc = acc + jnp.dot(w_ref[kh * K + kw],
                                    patch.reshape(Cin, Hout * Wout),
                                    preferred_element_type=jnp.float32)
        y = acc

    y = y + b_ref[...]                                         # (Cout,1) broadcast
    y = jnp.where(y > 0, y, 0.1 * y)                           # leaky_relu(0.1)
    o_ref[0] = y.astype(o_ref.dtype)


def f_conv_layer(x_nchw, weight_oihw, bias, *, stride=1):
    """Forward pass of f_ConvLayer. Input/Output are NCHW like PyTorch."""
    N, Cin, H, W = x_nchw.shape
    Cout, Cin_w, K, K2 = weight_oihw.shape
    assert Cin == Cin_w and K == K2

    pad = K // 2
    Hp, Wp = H + 2 * pad, W + 2 * pad
    Hout = (Hp - K) // stride + 1
    Wout = (Wp - K) // stride + 1

    # Tiny parameter re-layouts only (no full-tensor activations touched).
    w_taps = jnp.transpose(weight_oihw, (2, 3, 0, 1)).reshape(K * K, Cout, Cin)
    w_taps = w_taps.astype(jnp.float32)
    b2 = bias.reshape(Cout, 1).astype(jnp.float32)

    kern = functools.partial(_f_conv_kernel, K=K, stride=stride, pad=pad,
                             H=H, W=W, Hout=Hout, Wout=Wout)

    out_flat = pl.pallas_call(
        kern,
        out_shape=jax.ShapeDtypeStruct((N, Cout, Hout * Wout), x_nchw.dtype),
        grid=(N,),
        in_specs=[
            pl.BlockSpec((1, Cin, H, W), lambda n: (n, 0, 0, 0)),
            pl.BlockSpec((K * K, Cout, Cin), lambda n: (0, 0, 0)),
            pl.BlockSpec((Cout, 1), lambda n: (0, 0)),
        ],
        out_specs=pl.BlockSpec((1, Cout, Hout * Wout), lambda n: (n, 0, 0)),
        compiler_params=pltpu.CompilerParams(
            dimension_semantics=("parallel",)),                # independent images
    )(x_nchw, w_taps, b2)

    # Contiguous reshape (metadata only) back to NCHW.
    return out_flat.reshape(N, Cout, Hout, Wout)


def _reference(x_nchw, weight_oihw, bias, *, stride=1):
    """Pure-JAX reference (mirrors PyTorch semantics) for validation."""
    K = weight_oihw.shape[-1]
    pad = K // 2
    xp = jnp.pad(x_nchw, ((0, 0), (0, 0), (pad, pad), (pad, pad)), mode="reflect")
    y = lax.conv_general_dilated(
        xp, weight_oihw, (stride, stride), "VALID",
        dimension_numbers=("NCHW", "OIHW", "NCHW"))
    y = y + bias[None, :, None, None]
    return jnp.where(y > 0, y, 0.1 * y)


if __name__ == "__main__":
    # Small shapes consistent with the module's forward pass.
    N, Cin, H, W = 2, 4, 16, 16
    Cout, K, stride = 8, 3, 1

    key = jax.random.PRNGKey(0)
    kx, kw, kb = jax.random.split(key, 3)

    x = jax.random.normal(kx, (N, Cin, H, W), dtype=jnp.float32)
    # Deterministic init mimicking nn.Conv2d default (uniform in +-1/sqrt(fan_in)).
    bound = 1.0 / jnp.sqrt(jnp.array(Cin * K * K, jnp.float32))
    weight = jax.random.uniform(kw, (Cout, Cin, K, K), jnp.float32, -bound, bound)
    bias = jax.random.uniform(kb, (Cout,), jnp.float32, -bound, bound)

    out = f_conv_layer(x, weight, bias, stride=stride)
    out = jax.block_until_ready(out)

    ref = jax.block_until_ready(_reference(x, weight, bias, stride=stride))
    assert out.shape == (N, Cout, H, W), out.shape
    assert jnp.allclose(out, ref, atol=1e-4, rtol=1e-4), float(
        jnp.max(jnp.abs(out - ref)))

    print("KERNEL_OK")
</pallas_src>

<mosaic_0001>
module attributes {stable_mosaic.version = 11 : i64} {
  func.func @_f_conv_kernel(%arg0: i32, %arg1: memref<1x4x16x16xf32, #tpu.memory_space<vmem>>, %arg2: memref<9x8x4xf32, #tpu.memory_space<vmem>>, %arg3: memref<8x1xf32, #tpu.memory_space<vmem>>, %arg4: memref<1x8x256xf32, #tpu.memory_space<vmem>>) attributes {dimension_semantics = [#tpu.dimension_semantics<parallel>], iteration_bounds = array<i64: 2>, scalar_prefetch = 0 : i64, scratch_operands = 0 : i64, tpu.core_type = #tpu.core_type<tc>, window_params = [{transform_indices = @transform_0, window_bounds = array<i64: 1, 4, 16, 16>}, {pipeline_mode = #tpu.pipeline_mode<synchronous>, transform_indices = @transform_1, window_bounds = array<i64: 9, 8, 4>}, {pipeline_mode = #tpu.pipeline_mode<synchronous>, transform_indices = @transform_2, window_bounds = array<i64: 8, 1>}, {transform_indices = @transform_3, window_bounds = array<i64: 1, 8, 256>}]} {
    %c0 = arith.constant 0 : index
    %c0_0 = arith.constant 0 : index
    %c0_1 = arith.constant 0 : index
    %c0_2 = arith.constant 0 : index
    %0 = vector.load %arg1[%c0, %c0_0, %c0_1, %c0_2] : memref<1x4x16x16xf32, #tpu.memory_space<vmem>>, vector<1x4x16x16xf32>
    %1 = vector.shape_cast %0 : vector<1x4x16x16xf32> to vector<4x16x16xf32>
    %2 = vector.extract_strided_slice %1 {offsets = [0, 0, 1], sizes = [4, 16, 1], strides = [1, 1, 1]} : vector<4x16x16xf32> to vector<4x16x1xf32>
    %3 = vector.extract_strided_slice %1 {offsets = [0, 0, 14], sizes = [4, 16, 1], strides = [1, 1, 1]} : vector<4x16x16xf32> to vector<4x16x1xf32>
    %4 = tpu.concatenate %2, %1, %3 in 2 : vector<4x16x1xf32>, vector<4x16x16xf32>, vector<4x16x1xf32> -> vector<4x16x18xf32>
    %5 = vector.extract_strided_slice %4 {offsets = [0, 1, 0], sizes = [4, 1, 18], strides = [1, 1, 1]} : vector<4x16x18xf32> to vector<4x1x18xf32>
    %6 = vector.extract_strided_slice %4 {offsets = [0, 14, 0], sizes = [4, 1, 18], strides = [1, 1, 1]} : vector<4x16x18xf32> to vector<4x1x18xf32>
    %7 = tpu.concatenate %5, %4, %6 in 1 : vector<4x1x18xf32>, vector<4x16x18xf32>, vector<4x1x18xf32> -> vector<4x18x18xf32>
    %cst = arith.constant 0.000000e+00 : f32
    %8 = vector.broadcast %cst : f32 to vector<4x1x18xf32>
    %9 = tpu.concatenate %7, %8 in 1 : vector<4x18x18xf32>, vector<4x1x18xf32> -> vector<4x19x18xf32>
    %10 = vector.shape_cast %9 : vector<4x19x18xf32> to vector<4x342xf32>
    %cst_3 = arith.constant 0.000000e+00 : f32
    %11 = vector.broadcast %cst_3 : f32 to vector<8x288xf32>
    %12 = vector.extract_strided_slice %10 {offsets = [0, 0], sizes = [4, 288], strides = [1, 1]} : vector<4x342xf32> to vector<4x288xf32>
    %c0_4 = arith.constant 0 : index
    %c0_5 = arith.constant 0 : index
    %c0_6 = arith.constant 0 : index
    %13 = vector.load %arg2[%c0_4, %c0_5, %c0_6] : memref<9x8x4xf32, #tpu.memory_space<vmem>>, vector<1x8x4xf32>
    %14 = vector.shape_cast %13 : vector<1x8x4xf32> to vector<8x4xf32>
    %cst_7 = arith.constant dense<0.000000e+00> : vector<8x288xf32>
    %15 = tpu.matmul %14, %12, %cst_7 {dimension_numbers = #tpu.dot_dimension_numbers<[1], [0], [0], [1], [0, 0, 1, 1], [], []>} : vector<8x4xf32>, vector<4x288xf32>, vector<8x288xf32> -> vector<8x288xf32>
    %16 = arith.addf %11, %15 : vector<8x288xf32>
    %17 = vector.extract_strided_slice %10 {offsets = [0, 1], sizes = [4, 288], strides = [1, 1]} : vector<4x342xf32> to vector<4x288xf32>
    %c1 = arith.constant 1 : index
    %c0_8 = arith.constant 0 : index
    %c0_9 = arith.constant 0 : index
    %18 = vector.load %arg2[%c1, %c0_8, %c0_9] : memref<9x8x4xf32, #tpu.memory_space<vmem>>, vector<1x8x4xf32>
    %19 = vector.shape_cast %18 : vector<1x8x4xf32> to vector<8x4xf32>
    %cst_10 = arith.constant dense<0.000000e+00> : vector<8x288xf32>
    %20 = tpu.matmul %19, %17, %cst_10 {dimension_numbers = #tpu.dot_dimension_numbers<[1], [0], [0], [1], [0, 0, 1, 1], [], []>} : vector<8x4xf32>, vector<4x288xf32>, vector<8x288xf32> -> vector<8x288xf32>
    %21 = arith.addf %16, %20 : vector<8x288xf32>
    %22 = vector.extract_strided_slice %10 {offsets = [0, 2], sizes = [4, 288], strides = [1, 1]} : vector<4x342xf32> to vector<4x288xf32>
    %c2 = arith.constant 2 : index
    %c0_11 = arith.constant 0 : index
    %c0_12 = arith.constant 0 : index
    %23 = vector.load %arg2[%c2, %c0_11, %c0_12] : memref<9x8x4xf32, #tpu.memory_space<vmem>>, vector<1x8x4xf32>
    %24 = vector.shape_cast %23 : vector<1x8x4xf32> to vector<8x4xf32>
    %cst_13 = arith.constant dense<0.000000e+00> : vector<8x288xf32>
    %25 = tpu.matmul %24, %22, %cst_13 {dimension_numbers = #tpu.dot_dimension_numbers<[1], [0], [0], [1], [0, 0, 1, 1], [], []>} : vector<8x4xf32>, vector<4x288xf32>, vector<8x288xf32> -> vector<8x288xf32>
    %26 = arith.addf %21, %25 : vector<8x288xf32>
    %27 = vector.extract_strided_slice %10 {offsets = [0, 18], sizes = [4, 288], strides = [1, 1]} : vector<4x342xf32> to vector<4x288xf32>
    %c3 = arith.constant 3 : index
    %c0_14 = arith.constant 0 : index
    %c0_15 = arith.constant 0 : index
    %28 = vector.load %arg2[%c3, %c0_14, %c0_15] : memref<9x8x4xf32, #tpu.memory_space<vmem>>, vector<1x8x4xf32>
    %29 = vector.shape_cast %28 : vector<1x8x4xf32> to vector<8x4xf32>
    %cst_16 = arith.constant dense<0.000000e+00> : vector<8x288xf32>
    %30 = tpu.matmul %29, %27, %cst_16 {dimension_numbers = #tpu.dot_dimension_numbers<[1], [0], [0], [1], [0, 0, 1, 1], [], []>} : vector<8x4xf32>, vector<4x288xf32>, vector<8x288xf32> -> vector<8x288xf32>
    %31 = arith.addf %26, %30 : vector<8x288xf32>
    %32 = vector.extract_strided_slice %10 {offsets = [0, 19], sizes = [4, 288], strides = [1, 1]} : vector<4x342xf32> to vector<4x288xf32>
    %c4 = arith.constant 4 : index
    %c0_17 = arith.constant 0 : index
    %c0_18 = arith.constant 0 : index
    %33 = vector.load %arg2[%c4, %c0_17, %c0_18] : memref<9x8x4xf32, #tpu.memory_space<vmem>>, vector<1x8x4xf32>
    %34 = vector.shape_cast %33 : vector<1x8x4xf32> to vector<8x4xf32>
    %cst_19 = arith.constant dense<0.000000e+00> : vector<8x288xf32>
    %35 = tpu.matmul %34, %32, %cst_19 {dimension_numbers = #tpu.dot_dimension_numbers<[1], [0], [0], [1], [0, 0, 1, 1], [], []>} : vector<8x4xf32>, vector<4x288xf32>, vector<8x288xf32> -> vector<8x288xf32>
    %36 = arith.addf %31, %35 : vector<8x288xf32>
    %37 = vector.extract_strided_slice %10 {offsets = [0, 20], sizes = [4, 288], strides = [1, 1]} : vector<4x342xf32> to vector<4x288xf32>
    %c5 = arith.constant 5 : index
    %c0_20 = arith.constant 0 : index
    %c0_21 = arith.constant 0 : index
    %38 = vector.load %arg2[%c5, %c0_20, %c0_21] : memref<9x8x4xf32, #tpu.memory_space<vmem>>, vector<1x8x4xf32>
    %39 = vector.shape_cast %38 : vector<1x8x4xf32> to vector<8x4xf32>
    %cst_22 = arith.constant dense<0.000000e+00> : vector<8x288xf32>
    %40 = tpu.matmul %39, %37, %cst_22 {dimension_numbers = #tpu.dot_dimension_numbers<[1], [0], [0], [1], [0, 0, 1, 1], [], []>} : vector<8x4xf32>, vector<4x288xf32>, vector<8x288xf32> -> vector<8x288xf32>
    %41 = arith.addf %36, %40 : vector<8x288xf32>
    %42 = vector.extract_strided_slice %10 {offsets = [0, 36], sizes = [4, 288], strides = [1, 1]} : vector<4x342xf32> to vector<4x288xf32>
    %c6 = arith.constant 6 : index
    %c0_23 = arith.constant 0 : index
    %c0_24 = arith.constant 0 : index
    %43 = vector.load %arg2[%c6, %c0_23, %c0_24] : memref<9x8x4xf32, #tpu.memory_space<vmem>>, vector<1x8x4xf32>
    %44 = vector.shape_cast %43 : vector<1x8x4xf32> to vector<8x4xf32>
    %cst_25 = arith.constant dense<0.000000e+00> : vector<8x288xf32>
    %45 = tpu.matmul %44, %42, %cst_25 {dimension_numbers = #tpu.dot_dimension_numbers<[1], [0], [0], [1], [0, 0, 1, 1], [], []>} : vector<8x4xf32>, vector<4x288xf32>, vector<8x288xf32> -> vector<8x288xf32>
    %46 = arith.addf %41, %45 : vector<8x288xf32>
    %47 = vector.extract_strided_slice %10 {offsets = [0, 37], sizes = [4, 288], strides = [1, 1]} : vector<4x342xf32> to vector<4x288xf32>
    %c7 = arith.constant 7 : index
    %c0_26 = arith.constant 0 : index
    %c0_27 = arith.constant 0 : index
    %48 = vector.load %arg2[%c7, %c0_26, %c0_27] : memref<9x8x4xf32, #tpu.memory_space<vmem>>, vector<1x8x4xf32>
    %49 = vector.shape_cast %48 : vector<1x8x4xf32> to vector<8x4xf32>
    %cst_28 = arith.constant dense<0.000000e+00> : vector<8x288xf32>
    %50 = tpu.matmul %49, %47, %cst_28 {dimension_numbers = #tpu.dot_dimension_numbers<[1], [0], [0], [1], [0, 0, 1, 1], [], []>} : vector<8x4xf32>, vector<4x288xf32>, vector<8x288xf32> -> vector<8x288xf32>
    %51 = arith.addf %46, %50 : vector<8x288xf32>
    %52 = vector.extract_strided_slice %10 {offsets = [0, 38], sizes = [4, 288], strides = [1, 1]} : vector<4x342xf32> to vector<4x288xf32>
    %c8 = arith.constant 8 : index
    %c0_29 = arith.constant 0 : index
    %c0_30 = arith.constant 0 : index
    %53 = vector.load %arg2[%c8, %c0_29, %c0_30] : memref<9x8x4xf32, #tpu.memory_space<vmem>>, vector<1x8x4xf32>
    %54 = vector.shape_cast %53 : vector<1x8x4xf32> to vector<8x4xf32>
    %cst_31 = arith.constant dense<0.000000e+00> : vector<8x288xf32>
    %55 = tpu.matmul %54, %52, %cst_31 {dimension_numbers = #tpu.dot_dimension_numbers<[1], [0], [0], [1], [0, 0, 1, 1], [], []>} : vector<8x4xf32>, vector<4x288xf32>, vector<8x288xf32> -> vector<8x288xf32>
    %56 = arith.addf %51, %55 : vector<8x288xf32>
    %57 = vector.shape_cast %56 : vector<8x288xf32> to vector<8x16x18xf32>
    %58 = vector.extract_strided_slice %57 {offsets = [0, 0, 0], sizes = [8, 16, 16], strides = [1, 1, 1]} : vector<8x16x18xf32> to vector<8x16x16xf32>
    %59 = vector.shape_cast %58 : vector<8x16x16xf32> to vector<8x256xf32>
    %c0_32 = arith.constant 0 : index
    %c0_33 = arith.constant 0 : index
    %60 = vector.load %arg3[%c0_32, %c0_33] : memref<8x1xf32, #tpu.memory_space<vmem>>, vector<8x1xf32>
    %61 = vector.broadcast %60 : vector<8x1xf32> to vector<8x256xf32>
    %62 = arith.addf %59, %61 : vector<8x256xf32>
    %cst_34 = arith.constant 0.000000e+00 : f32
    %63 = vector.broadcast %cst_34 : f32 to vector<8x256xf32>
    %64 = arith.cmpf ogt, %62, %63 : vector<8x256xf32>
    %cst_35 = arith.constant 1.000000e-01 : f32
    %65 = vector.broadcast %cst_35 : f32 to vector<8x256xf32>
    %66 = arith.mulf %65, %62 : vector<8x256xf32>
    %67 = arith.select %64, %62, %66 : vector<8x256xi1>, vector<8x256xf32>
    %c0_36 = arith.constant 0 : index
    %c0_37 = arith.constant 0 : index
    %c0_38 = arith.constant 0 : index
    %68 = vector.load %arg4[%c0_36, %c0_37, %c0_38] : memref<1x8x256xf32, #tpu.memory_space<vmem>>, vector<1x8x256xf32>
    %69 = vector.shape_cast %68 : vector<1x8x256xf32> to vector<8x256xf32>
    %70 = vector.shape_cast %67 : vector<8x256xf32> to vector<1x8x256xf32>
    tpu.vector_store %arg4[%c0_36, %c0_37, %c0_38], %70 {strides = array<i32>} : memref<1x8x256xf32, #tpu.memory_space<vmem>>, vector<1x8x256xf32>,
    return
  }
  func.func @transform_0(%arg0: i32) -> (i32, i32, i32, i32) {
    %c0_i32 = arith.constant 0 : i32
    %c0_i32_0 = arith.constant 0 : i32
    %c0_i32_1 = arith.constant 0 : i32
    %c0_i32_2 = arith.constant 0 : i32
    return %arg0, %c0_i32, %c0_i32_0, %c0_i32_1 : i32, i32, i32, i32
  }
  func.func @transform_1(%arg0: i32) -> (i32, i32, i32) {
    %c0_i32 = arith.constant 0 : i32
    %c0_i32_0 = arith.constant 0 : i32
    %c0_i32_1 = arith.constant 0 : i32
    %c0_i32_2 = arith.constant 0 : i32
    return %c0_i32, %c0_i32_0, %c0_i32_1 : i32, i32, i32
  }
  func.func @transform_2(%arg0: i32) -> (i32, i32) {
    %c0_i32 = arith.constant 0 : i32
    %c0_i32_0 = arith.constant 0 : i32
    %c0_i32_1 = arith.constant 0 : i32
    return %c0_i32, %c0_i32_0 : i32, i32
  }
  func.func @transform_3(%arg0: i32) -> (i32, i32, i32) {
    %c0_i32 = arith.constant 0 : i32
    %c0_i32_0 = arith.constant 0 : i32
    %c0_i32_1 = arith.constant 0 : i32
    return %arg0, %c0_i32, %c0_i32_0 : i32, i32, i32
  }
}

</mosaic_0001>

<llo_original>
// kernel: tpu_custom_call.1
$region0: #{tpu_custom_call.1}
  #allocation0 [shape = 'u32[]', space=smem, size = 0x4, offset = 0x4, fixed_abs, tag = 'smem constant byte address 0x4 - core index']
  #allocation1 [shape = 'u32[144,128]{1,0:T(1,128)}', space=vmem, size = 0x12000, scoped, tag = 'internal scratch']
  %s0 = inlined_call_operand.hbm [shape: f32[2,4,16,16], index: 0, kind: input, shape index: {}]
  %s1 = inlined_call_operand.vmem [shape: f32[9,8,4], index: 1, kind: input, shape index: {}]
  %s2 = inlined_call_operand.vmem [shape: f32[8,1], index: 2, kind: input, shape index: {}]
  %s3 = inlined_call_operand.hbm [shape: f32[2,8,256], index: 3, kind: output, shape index: {}]
  %s4 = sld [smem:[#allocation0]]
  $region49: #{tpu_custom_call.1} parent=0
    _
  %s6 = ssub.s32 1, %s4
  %s7 = scalar_select 0, %s6, %s4
  $region1: #{tpu_custom_call.1} parent=0
    #allocation2 [shape = 'u8[65536]{0}', space=vmem, size = 0x10000, scoped, tag = 'input window, operand 0']
    #allocation3 [shape = 's32[2]{0}', space=sflag, size = 0x8, scoped, tag = 'scoped memory for tpu_custom_call.1']
    #allocation4 [shape = 's32[2]{0}', space=sflag, size = 0x8, scoped, tag = 'scoped memory for tpu_custom_call.1']
    #allocation5 [shape = 'u8[16384]{0}', space=vmem, size = 0x4000, scoped, tag = 'output window, operand 0']
    %8 = vsyncpa [#allocation3], 0
    %s9 = scalar_lea.sflag [#allocation3], 1
    %10 = vsyncpa %s9, 0
    %11 = vsyncpa [#allocation4], 0
    %s12 = scalar_lea.sflag [#allocation4], 1
    %13 = vsyncpa %s12, 0
    loop: start=0, step=1, limit=4
    $region2: #{tpu_custom_call.1} parent=1 // loop_pre_header
      _
    $region3: #{tpu_custom_call.1} parent=1 // loop_header
      %s15 = sphi 0, %s19
      %p16 = scmp.ge.s32.totalorder %s15, 4
      %s25 = sphi 0, %s27
      %s28 = sphi 0, %s25
      %s29 = sphi 0, %s28
      %s45 = sphi 0, %s29
      %s49 = sphi 0, %s49
      %s51 = sphi 0, %s49
      %s52 = sphi 0, %s51
      %s66 = sphi 0, %s52
      %s70 = sphi 0, %s70
      %s72 = sphi 0, %s70
      %s73 = sphi 0, %s72
      %s87 = sphi 0, %s73
      %s93 = sphi 0, %s95
      %s96 = sphi 0, %s93
      %s97 = sphi 0, %s96
      %s113 = sphi 0, %s97
    $region4: #{tpu_custom_call.1} parent=1 // loop_header_branch
      %18 = sbr.rel (%p16) target = $region8
    $region5: #{tpu_custom_call.1} parent=1 // loop_body
      %s20 = ssub.s32 %s15, 1
      %s21 = ssub.s32 %s15, 2
      %s22 = sadd.s32 %s15, 1
      %s23 = ssub.s32 %s15, %s22
      %p24 = scmp.eq.s32.totalorder %s23, 0
      %s26 = sadd.s32 %s25, 1
      %s27 = scalar_select %p24, %s25, %s26
      %p30 = pneg %p24
      %p31 = scmp.eq.s32.totalorder %s15, 1
      %p32 = por %p30, %p31
      %p33 = scmp.ne.s32.totalorder %s25, %s28
      %p34 = scmp.eq.s32.totalorder %s15, 0
      %p35 = por %p33, %p34
      %p36 = scmp.ne.s32.totalorder %s25, %s28
      %p37 = scmp.eq.s32.totalorder %s20, 1
      %p38 = por %p36, %p37
      %p39 = scmp.ne.s32.totalorder %s28, %s29
      %p40 = scmp.eq.s32.totalorder %s20, 0
      %p41 = por %p39, %p40
      %p42 = scmp.ne.s32.totalorder %s28, %s29
      %p43 = scmp.eq.s32.totalorder %s21, 1
      %p44 = por %p42, %p43
      %p46 = scmp.ne.s32.totalorder %s29, %s45
      %p47 = scmp.eq.s32.totalorder %s21, 0
      %p48 = por %p46, %p47
      %s50 = sadd.s32 %s49, 1
      %p53 = scmp.eq.s32.totalorder %s15, 1
      %p54 = scmp.ne.s32.totalorder %s49, %s51
      %p55 = scmp.eq.s32.totalorder %s15, 0
      %p56 = por %p54, %p55
      %p57 = scmp.ne.s32.totalorder %s49, %s51
      %p58 = scmp.eq.s32.totalorder %s20, 1
      %p59 = por %p57, %p58
      %p60 = scmp.ne.s32.totalorder %s51, %s52
      %p61 = scmp.eq.s32.totalorder %s20, 0
      %p62 = por %p60, %p61
      %p63 = scmp.ne.s32.totalorder %s51, %s52
      %p64 = scmp.eq.s32.totalorder %s21, 1
      %p65 = por %p63, %p64
      %p67 = scmp.ne.s32.totalorder %s52, %s66
      %p68 = scmp.eq.s32.totalorder %s21, 0
      %p69 = por %p67, %p68
      %s71 = sadd.s32 %s70, 1
      %p74 = scmp.eq.s32.totalorder %s15, 1
      %p75 = scmp.ne.s32.totalorder %s70, %s72
      %p76 = scmp.eq.s32.totalorder %s15, 0
      %p77 = por %p75, %p76
      %p78 = scmp.ne.s32.totalorder %s70, %s72
      %p79 = scmp.eq.s32.totalorder %s20, 1
      %p80 = por %p78, %p79
      %p81 = scmp.ne.s32.totalorder %s72, %s73
      %p82 = scmp.eq.s32.totalorder %s20, 0
      %p83 = por %p81, %p82
      %p84 = scmp.ne.s32.totalorder %s72, %s73
      %p85 = scmp.eq.s32.totalorder %s21, 1
      %p86 = por %p84, %p85
      %p88 = scmp.ne.s32.totalorder %s73, %s87
      %p89 = scmp.eq.s32.totalorder %s21, 0
      %p90 = por %p88, %p89
      %s91 = ssub.s32 %s15, %s22
      %p92 = scmp.eq.s32.totalorder %s91, 0
      %s94 = sadd.s32 %s93, 1
      %s95 = scalar_select %p92, %s93, %s94
      %p98 = pneg %p92
      %p99 = scmp.eq.s32.totalorder %s15, 1
      %p100 = por %p98, %p99
      %p101 = scmp.ne.s32.totalorder %s93, %s96
      %p102 = scmp.eq.s32.totalorder %s15, 0
      %p103 = por %p101, %p102
      %p104 = scmp.ne.s32.totalorder %s93, %s96
      %p105 = scmp.eq.s32.totalorder %s20, 1
      %p106 = por %p104, %p105
      %p107 = scmp.ne.s32.totalorder %s96, %s97
      %p108 = scmp.eq.s32.totalorder %s20, 0
      %p109 = por %p107, %p108
      %p110 = scmp.ne.s32.totalorder %s96, %s97
      %p111 = scmp.eq.s32.totalorder %s21, 1
      %p112 = por %p110, %p111
      %p114 = scmp.ne.s32.totalorder %s97, %s113
      %p115 = scmp.eq.s32.totalorder %s21, 0
      %p116 = por %p114, %p115
      %p117 = scmp.le.s32.totalorder 1, %s15
      %p118 = scmp.lt.s32.totalorder %s15, 3
      %p119 = pnand %p117, %p118
      %p120 = pneg %p119
      // Predicated region
      $region9: #{tpu_custom_call.1} parent=5 // pred_check
        _
      $region10: #{tpu_custom_call.1} parent=5 // pred_check_branch
        %122 = sbr.rel (%p119) target = $region12
      $region11: #{tpu_custom_call.1} parent=5 // pred_region
        %s123 = ssub.s32 %s15, 1
        // Predicated region
        $region13: #{tpu_custom_call.1} parent=11 // pred_check
          %p124 = pneg %p62
        $region14: #{tpu_custom_call.1} parent=11 // pred_check_branch
          %126 = sbr.rel (%p124) target = $region16
        $region15: #{tpu_custom_call.1} parent=11 // pred_region
          _
        $region16: #{tpu_custom_call.1} parent=11 // pred_fallthru
          _
        // Predicated region
        $region17: #{tpu_custom_call.1} parent=11 // pred_check
          %p127 = pneg %p83
        $region18: #{tpu_custom_call.1} parent=11 // pred_check_branch
          %129 = sbr.rel (%p127) target = $region20
        $region19: #{tpu_custom_call.1} parent=11 // pred_region
          _
        $region20: #{tpu_custom_call.1} parent=11 // pred_fallthru
          _
      $region12: #{tpu_custom_call.1} parent=5 // pred_fallthru
        _
      %p130 = scmp.lt.s32.totalorder %s15, 2
      // Predicated region
      $region21: #{tpu_custom_call.1} parent=5 // pred_check
        %p131 = pneg %p130
      $region22: #{tpu_custom_call.1} parent=5 // pred_check_branch
        %133 = sbr.rel (%p131) target = $region24
      $region23: #{tpu_custom_call.1} parent=5 // pred_region
        // Predicated region
        $region25: #{tpu_custom_call.1} parent=23 // pred_check
          %p134 = pneg %p35
        $region26: #{tpu_custom_call.1} parent=23 // pred_check_branch
          %136 = sbr.rel (%p134) target = $region28
        $region27: #{tpu_custom_call.1} parent=23 // pred_region
          %s137 = sand.u32 %s25, 1
          %s138 = scalar_lea.sflag [#allocation3], %s137
          %s139 = sand.u32 %s25, 1
          %s140 = smul.addr %s139, 64
          %s141 = scalar_lea.vmem [#allocation2], %s140
          %s143 = ssub.s32 1024, 1024
          %144 = vsyncadd %s138, %s143
          %s145 = smul.addr %s15, 8
          %s146 = smul.addr %s145, 128
          %s147 = scalar_lea.hbm %s0, %s146
          %s148 = sshll.u32 %s141, 4
          %s149 = int_to_ptr.vmem [resolvable:$true] %s148
          %154 = dma.hbm_to_vmem [thread:$0]  %s147, 1024, %s149, %s138, 128, 128, 8
        $region28: #{tpu_custom_call.1} parent=23 // pred_fallthru
          _
      $region24: #{tpu_custom_call.1} parent=5 // pred_fallthru
        _
      %p155 = scmp.le.s32.totalorder 1, %s15
      %p156 = scmp.lt.s32.totalorder %s15, 3
      %p157 = pnand %p155, %p156
      %p158 = pneg %p157
      // Predicated region
      $region29: #{tpu_custom_call.1} parent=5 // pred_check
        _
      $region30: #{tpu_custom_call.1} parent=5 // pred_check_branch
        %160 = sbr.rel (%p157) target = $region32
      $region31: #{tpu_custom_call.1} parent=5 // pred_region
        %s161 = ssub.s32 %s15, 1
        %s162 = sand.u32 %s28, 1
        %s163 = scalar_lea.sflag [#allocation3], %s162
        %s164 = sand.u32 %s28, 1
        %s165 = smul.addr %s164, 64
        %s166 = scalar_lea.vmem [#allocation2], %s165
        // Predicated region
        $region33: #{tpu_custom_call.1} parent=31 // pred_check
          %p167 = pneg %p41
        $region34: #{tpu_custom_call.1} parent=31 // pred_check_branch
          %169 = sbr.rel (%p167) target = $region36
        $region35: #{tpu_custom_call.1} parent=31 // pred_region
          %170 = dma.done %s163, 1024
        $region36: #{tpu_custom_call.1} parent=31 // pred_fallthru
          _
        %s171 = sand.u32 %s28, 1
        %s172 = scalar_lea.sflag [#allocation3], %s171
        %s173 = sand.u32 %s28, 1
        %s174 = smul.addr %s173, 64
        %s175 = scalar_lea.vmem [#allocation2], %s174
        %p176 = pneg %p41
        %p177 = pneg %p38
        %p178 = pneg %p62
        %p179 = pneg %p59
        %p180 = pneg %p83
        %p181 = pneg %p80
        %p182 = pneg %p109
        %p183 = pneg %p106
        %s184 = sand.u32 %s96, 1
        %s185 = scalar_lea.sflag [#allocation4], %s184
        %s186 = sand.u32 %s96, 1
        %s187 = smul.addr %s186, 16
        %s188 = scalar_lea.vmem [#allocation5], %s187
        %v189 = vld [vmem:[%s166] sm:$0xff]
        %v190 = vld [vmem:[%s166 + $0x8] sm:$0xff]
        %v191 = vld [vmem:[%s166 + $0x10] sm:$0xff]
        %v192 = vld [vmem:[%s166 + $0x18] sm:$0xff]
        %v193 = vld [vmem:[%s166 + $0x20] sm:$0xff]
        %v194 = vld [vmem:[%s166 + $0x28] sm:$0xff]
        %v195 = vld [vmem:[%s166 + $0x30] sm:$0xff]
        %v196 = vld [vmem:[%s166 + $0x38] sm:$0xff]
        %205 = vrot.lane.b32.xlu0 %v189, 127
        %v206 = vpop.permute.xlu0 %205
        %207 = vrot.lane.b32.xlu0 %v190, 127
        %v208 = vpop.permute.xlu0 %207
        %209 = vrot.lane.b32.xlu0 %v191, 127
        %v210 = vpop.permute.xlu0 %209
        %211 = vrot.lane.b32.xlu0 %v192, 127
        %v212 = vpop.permute.xlu0 %211
        %213 = vrot.lane.b32.xlu0 %v193, 127
        %v214 = vpop.permute.xlu0 %213
        %215 = vrot.lane.b32.xlu0 %v194, 127
        %v216 = vpop.permute.xlu0 %215
        %217 = vrot.lane.b32.xlu0 %v195, 127
        %v218 = vpop.permute.xlu0 %217
        %219 = vrot.lane.b32.xlu0 %v196, 127
        %v220 = vpop.permute.xlu0 %219
        %229 = vrot.lane.b32.xlu0 %v189, 1
        %v230 = vpop.permute.xlu0 %229
        %231 = vrot.lane.b32.xlu0 %v190, 1
        %v232 = vpop.permute.xlu0 %231
        %233 = vrot.lane.b32.xlu0 %v191, 1
        %v234 = vpop.permute.xlu0 %233
        %235 = vrot.lane.b32.xlu0 %v192, 1
        %v236 = vpop.permute.xlu0 %235
        %237 = vrot.lane.b32.xlu0 %v193, 1
        %v238 = vpop.permute.xlu0 %237
        %239 = vrot.lane.b32.xlu0 %v194, 1
        %v240 = vpop.permute.xlu0 %239
        %241 = vrot.lane.b32.xlu0 %v195, 1
        %v242 = vpop.permute.xlu0 %241
        %243 = vrot.lane.b32.xlu0 %v196, 1
        %v244 = vpop.permute.xlu0 %243
        %253 = vrot.lane.b32.xlu0 %v189, 3
        %v254 = vpop.permute.xlu0 %253
        %255 = vrot.lane.b32.xlu0 %v190, 3
        %v256 = vpop.permute.xlu0 %255
        %257 = vrot.lane.b32.xlu0 %v191, 3
        %v258 = vpop.permute.xlu0 %257
        %259 = vrot.lane.b32.xlu0 %v192, 3
        %v260 = vpop.permute.xlu0 %259
        %261 = vrot.lane.b32.xlu0 %v193, 3
        %v262 = vpop.permute.xlu0 %261
        %263 = vrot.lane.b32.xlu0 %v194, 3
        %v264 = vpop.permute.xlu0 %263
        %265 = vrot.lane.b32.xlu0 %v195, 3
        %v266 = vpop.permute.xlu0 %265
        %267 = vrot.lane.b32.xlu0 %v196, 3
        %v268 = vpop.permute.xlu0 %267
        %vm277 = vcmask 7168
        %v278 = vsel %vm277, %v206, %v230
        %v279 = vsel %vm277, %v208, %v232
        %v280 = vsel %vm277, %v210, %v234
        %v281 = vsel %vm277, %v212, %v236
        %v282 = vsel %vm277, %v214, %v238
        %v283 = vsel %vm277, %v216, %v240
        %v284 = vsel %vm277, %v218, %v242
        %v285 = vsel %vm277, %v220, %v244
        %vm286 = vcmask 138240
        %v287 = vsel %vm286, %v278, %v254
        %v288 = vsel %vm286, %v279, %v256
        %v289 = vsel %vm286, %v280, %v258
        %v290 = vsel %vm286, %v281, %v260
        %v291 = vsel %vm286, %v282, %v262
        %v292 = vsel %vm286, %v283, %v264
        %v293 = vsel %vm286, %v284, %v266
        %v294 = vsel %vm286, %v285, %v268
        %v299 = vrot.slane %v287, 1
        %v300 = vrot.slane %v289, 1
        %v301 = vrot.slane %v291, 1
        %v302 = vrot.slane %v293, 1
        %vm311 = vcmask 1040384
        %v312 = vrot.slane %v287, 7
        %v313 = vrot.slane %v288, 7
        %v314 = vsel %vm311, %v312, %v313
        %v315 = vrot.slane %v289, 7
        %v316 = vrot.slane %v290, 7
        %v317 = vsel %vm311, %v315, %v316
        %v318 = vrot.slane %v291, 7
        %v319 = vrot.slane %v292, 7
        %v320 = vsel %vm311, %v318, %v319
        %v321 = vrot.slane %v293, 7
        %v322 = vrot.slane %v294, 7
        %v323 = vsel %vm311, %v321, %v322
        %v336 = vrot.slane %v288, 5
        %v337 = vrot.slane %v290, 5
        %v338 = vrot.slane %v292, 5
        %v339 = vrot.slane %v294, 5
        %v344 = vsel %vm311, %v299, %v312
        %v345 = vsel %vm311, %v300, %v315
        %v346 = vsel %vm311, %v301, %v318
        %v347 = vsel %vm311, %v302, %v321
        %v348 = vsel %vm311, %v313, %v336
        %v349 = vsel %vm311, %v316, %v337
        %v350 = vsel %vm311, %v319, %v338
        %v351 = vsel %vm311, %v322, %v339
        %vm352 = vcmask 1041408
        %v353 = vsel %vm352, %v348, 0.0
        %v354 = vsel %vm352, %v349, 0.0
        %v355 = vsel %vm352, %v350, 0.0
        %v356 = vsel %vm352, %v351, 0.0
        %v357 = vcombine.low %v344, %v346
        %v358 = vcombine.high %v344, %v346
        %v360 = vunpack.c.l.s4 1983009808
        %v361 = vunpack.c.0.s8 %v360
        %v362 = vlaneseq
        %v363 = vshrl.u32 %v362, 7
        %v364 = vsub.s32 %v361, %v363
        %v365 = vrot.slane %v357, %v364
        %v367 = vunpack.c.l.s4 1983009808
        %v368 = vunpack.c.0.s8 %v367
        %v369 = vlaneseq
        %v370 = vshrl.u32 %v369, 7
        %v371 = vsub.s32 %v368, %v370
        %v372 = vrot.slane %v358, %v371
        %v373 = vcombine.low %v345, %v347
        %v374 = vcombine.high %v345, %v347
        %v376 = vunpack.c.l.s4 1983009808
        %v377 = vunpack.c.0.s8 %v376
        %v378 = vlaneseq
        %v379 = vshrl.u32 %v378, 7
        %v380 = vsub.s32 %v377, %v379
        %v381 = vrot.slane %v373, %v380
        %v383 = vunpack.c.l.s4 1983009808
        %v384 = vunpack.c.0.s8 %v383
        %v385 = vlaneseq
        %v386 = vshrl.u32 %v385, 7
        %v387 = vsub.s32 %v384, %v386
        %v388 = vrot.slane %v374, %v387
        %v389 = vcombine.low %v365, %v381
        %v390 = vcombine.high %v365, %v381
        %v392 = vunpack.c.l.s4 1934713408
        %v393 = vunpack.c.0.s8 %v392
        %v394 = vlaneseq
        %v395 = vshrl.u32 %v394, 7
        %v396 = vsub.s32 %v393, %v395
        %v397 = vrot.slane %v389, %v396
        %v399 = vunpack.c.l.s4 1934713408
        %v400 = vunpack.c.0.s8 %v399
        %v401 = vlaneseq
        %v402 = vshrl.u32 %v401, 7
        %v403 = vsub.s32 %v400, %v402
        %v404 = vrot.slane %v390, %v403
        %v405 = vcombine.low %v372, %v388
        %v406 = vcombine.high %v372, %v388
        %v408 = vunpack.c.l.s4 1934713408
        %v409 = vunpack.c.0.s8 %v408
        %v410 = vlaneseq
        %v411 = vshrl.u32 %v410, 7
        %v412 = vsub.s32 %v409, %v411
        %v413 = vrot.slane %v405, %v412
        %v415 = vunpack.c.l.s4 1934713408
        %v416 = vunpack.c.0.s8 %v415
        %v417 = vlaneseq
        %v418 = vshrl.u32 %v417, 7
        %v419 = vsub.s32 %v416, %v418
        %v420 = vrot.slane %v406, %v419
        %v421 = vcombine.high %v397, 0.0
        %v422 = vcombine.high %v404, 0.0
        %v423 = vcombine.high %v413, 0.0
        %v424 = vcombine.high %v420, 0.0
        %v425 = vcombine.low %v314, %v320
        %v426 = vcombine.high %v314, %v320
        %v428 = vunpack.c.l.s4 1983009808
        %v429 = vunpack.c.0.s8 %v428
        %v430 = vlaneseq
        %v431 = vshrl.u32 %v430, 7
        %v432 = vsub.s32 %v429, %v431
        %v433 = vrot.slane %v425, %v432
        %v435 = vunpack.c.l.s4 1983009808
        %v436 = vunpack.c.0.s8 %v435
        %v437 = vlaneseq
        %v438 = vshrl.u32 %v437, 7
        %v439 = vsub.s32 %v436, %v438
        %v440 = vrot.slane %v426, %v439
        %v441 = vcombine.low %v317, %v323
        %v442 = vcombine.high %v317, %v323
        %v444 = vunpack.c.l.s4 1983009808
        %v445 = vunpack.c.0.s8 %v444
        %v446 = vlaneseq
        %v447 = vshrl.u32 %v446, 7
        %v448 = vsub.s32 %v445, %v447
        %v449 = vrot.slane %v441, %v448
        %v451 = vunpack.c.l.s4 1983009808
        %v452 = vunpack.c.0.s8 %v451
        %v453 = vlaneseq
        %v454 = vshrl.u32 %v453, 7
        %v455 = vsub.s32 %v452, %v454
        %v456 = vrot.slane %v442, %v455
        %v457 = vcombine.low %v433, %v449
        %v458 = vcombine.high %v433, %v449
        %v460 = vunpack.c.l.s4 1934713408
        %v461 = vunpack.c.0.s8 %v460
        %v462 = vlaneseq
        %v463 = vshrl.u32 %v462, 7
        %v464 = vsub.s32 %v461, %v463
        %v465 = vrot.slane %v457, %v464
        %v467 = vunpack.c.l.s4 1934713408
        %v468 = vunpack.c.0.s8 %v467
        %v469 = vlaneseq
        %v470 = vshrl.u32 %v469, 7
        %v471 = vsub.s32 %v468, %v470
        %v472 = vrot.slane %v458, %v471
        %v473 = vcombine.low %v440, %v456
        %v474 = vcombine.high %v440, %v456
        %v476 = vunpack.c.l.s4 1934713408
        %v477 = vunpack.c.0.s8 %v476
        %v478 = vlaneseq
        %v479 = vshrl.u32 %v478, 7
        %v480 = vsub.s32 %v477, %v479
        %v481 = vrot.slane %v473, %v480
        %v483 = vunpack.c.l.s4 1934713408
        %v484 = vunpack.c.0.s8 %v483
        %v485 = vlaneseq
        %v486 = vshrl.u32 %v485, 7
        %v487 = vsub.s32 %v484, %v486
        %v488 = vrot.slane %v474, %v487
        %v489 = vcombine.high %v465, 0.0
        %v490 = vcombine.high %v472, 0.0
        %v491 = vcombine.high %v481, 0.0
        %v492 = vcombine.high %v488, 0.0
        %v493 = vcombine.low %v353, %v355
        %v495 = vunpack.c.l.s4 1983009808
        %v496 = vunpack.c.0.s8 %v495
        %v497 = vlaneseq
        %v498 = vshrl.u32 %v497, 7
        %v499 = vsub.s32 %v496, %v498
        %v500 = vrot.slane %v493, %v499
        %v501 = vcombine.low %v354, %v356
        %v503 = vunpack.c.l.s4 1983009808
        %v504 = vunpack.c.0.s8 %v503
        %v505 = vlaneseq
        %v506 = vshrl.u32 %v505, 7
        %v507 = vsub.s32 %v504, %v506
        %v508 = vrot.slane %v501, %v507
        %v509 = vcombine.low %v500, %v508
        %v510 = vcombine.high %v500, %v508
        %v512 = vunpack.c.l.s4 1934713408
        %v513 = vunpack.c.0.s8 %v512
        %v514 = vlaneseq
        %v515 = vshrl.u32 %v514, 7
        %v516 = vsub.s32 %v513, %v515
        %v517 = vrot.slane %v509, %v516
        %v518 = vcombine.high %v517, 0.0
        %v520 = vunpack.c.l.s4 1934713408
        %v521 = vunpack.c.0.s8 %v520
        %v522 = vlaneseq
        %v523 = vshrl.u32 %v522, 7
        %v524 = vsub.s32 %v521, %v523
        %v525 = vrot.slane %v510, %v524
        %527 = vrot.lane.b32.xlu0 %v421, 18
        %v528 = vpop.permute.xlu0 %527
        %531 = vrot.lane.b32.xlu0 %v404, 36
        %v532 = vpop.permute.xlu0 %531
        %535 = vrot.lane.b32.xlu0 %v422, 54
        %v536 = vpop.permute.xlu0 %535
        %539 = vrot.lane.b32.xlu0 %v413, 72
        %v540 = vpop.permute.xlu0 %539
        %543 = vrot.lane.b32.xlu0 %v423, 90
        %v544 = vpop.permute.xlu0 %543
        %547 = vrot.lane.b32.xlu0 %v420, 108
        %v548 = vpop.permute.xlu0 %547
        %551 = vrot.lane.b32.xlu0 %v424, 126
        %v552 = vpop.permute.xlu0 %551
        %555 = vrot.lane.b32.xlu0 %v465, 16
        %v556 = vpop.permute.xlu0 %555
        %559 = vrot.lane.b32.xlu0 %v489, 34
        %v560 = vpop.permute.xlu0 %559
        %563 = vrot.lane.b32.xlu0 %v472, 52
        %v564 = vpop.permute.xlu0 %563
        %567 = vrot.lane.b32.xlu0 %v490, 70
        %v568 = vpop.permute.xlu0 %567
        %571 = vrot.lane.b32.xlu0 %v481, 88
        %v572 = vpop.permute.xlu0 %571
        %575 = vrot.lane.b32.xlu0 %v491, 106
        %v576 = vpop.permute.xlu0 %575
        %579 = vrot.lane.b32.xlu0 %v488, 124
        %v580 = vpop.permute.xlu0 %579
        %583 = vrot.lane.b32.xlu0 %v492, 14
        %v584 = vpop.permute.xlu0 %583
        %587 = vrot.lane.b32.xlu0 %v517, 32
        %v588 = vpop.permute.xlu0 %587
        %591 = vrot.lane.b32.xlu0 %v518, 50
        %v592 = vpop.permute.xlu0 %591
        %595 = vrot.lane.b32.xlu0 %v525, 68
        %v596 = vpop.permute.xlu0 %595
        %vm598 = vcmask 146432
        %v599 = vsel %vm598, %v397, %v528
        %vm600 = vcmask 293888
        %v601 = vsel %vm600, %v599, %v532
        %vm602 = vcmask 441344
        %v603 = vsel %vm602, %v601, %v536
        %vm604 = vcmask 588800
        %v605 = vsel %vm604, %v603, %v540
        %vm606 = vcmask 736256
        %v607 = vsel %vm606, %v605, %v544
        %vm608 = vcmask 883712
        %v609 = vsel %vm608, %v607, %v548
        %vm610 = vcmask 1031168
        %v611 = vsel %vm610, %v609, %v552
        %vm612 = vcmask 130048
        %v613 = vsel %vm612, %v552, %v556
        %vm614 = vcmask 277504
        %v615 = vsel %vm614, %v613, %v560
        %vm616 = vcmask 424960
        %v617 = vsel %vm616, %v615, %v564
        %vm618 = vcmask 572416
        %v619 = vsel %vm618, %v617, %v568
        %vm620 = vcmask 719872
        %v621 = vsel %vm620, %v619, %v572
        %vm622 = vcmask 867328
        %v623 = vsel %vm622, %v621, %v576
        %vm624 = vcmask 1014784
        %v625 = vsel %vm624, %v623, %v580
        %vm626 = vcmask 113664
        %v627 = vsel %vm626, %v580, %v584
        %vm628 = vcmask 261120
        %v629 = vsel %vm628, %v627, %v588
        %vm630 = vcmask 408576
        %v631 = vsel %vm630, %v629, %v592
        %vm632 = vcmask 556032
        %v633 = vsel %vm632, %v631, %v596
        %v634 = vld [vmem:[%s1] sm:$0xff]
        %s635 = scalar_lea.vmem %s1, 8
        %v636 = vld [vmem:[%s635] sm:$0xff]
        %640 = vrot.lane.b32.xlu0 %v611, 127
        %v641 = vpop.permute.xlu0 %640
        %642 = vrot.lane.b32.xlu0 %v625, 127
        %v643 = vpop.permute.xlu0 %642
        %644 = vrot.lane.b32.xlu0 %v633, 127
        %v645 = vpop.permute.xlu0 %644
        %vm646 = vcmask 1039360
        %v647 = vsel %vm646, %v641, %v643
        %v648 = vsel %vm646, %v643, %v645
        %vm649 = vcmask 31744
        %v651 = vsel %vm649, %v636, 0
        %vm653 = vcmask 1043456
        %v654 = vsel %vm653, %v647, 0
        %v656 = vsel %vm653, %v648, 0
        %v658 = vsel %vm653, %v645, 0
        %660 = vmatprep.subr.mxu0 %v656
        %661 = vmatpush1.msra.mxu0 %v654
        %662 = vmatprep.subr.mxu0 0.0
        %663 = vmatpush1.msra.mxu0 0.0
        %664 = vmatprep.subr.mxu0 0.0
        %665 = vmatpush1.msra.mxu0 0.0
        %666 = vmatprep.subr.mxu0 0.0
        %667 = vmatpush1.msra.mxu0 0.0
        %668 = vmatprep.subr.mxu0 0.0
        %669 = vmatpush1.msra.mxu0 0.0
        %670 = vmatprep.subr.mxu0 0.0
        %671 = vmatpush1.msra.mxu0 0.0
        %672 = vmatprep.subr.mxu0 0.0
        %673 = vmatpush1.msra.mxu0 0.0
        %674 = vmatprep.subr.mxu0 0.0
        %675 = vmatpush1.msra.mxu0 0.0
        %676 = vmatprep.subr.mxu0 0.0
        %677 = vmatpush1.msra.mxu0 0.0
        %678 = vmatprep.subr.mxu0 0.0
        %679 = vmatpush1.msra.mxu0 0.0
        %680 = vmatprep.subr.mxu0 0.0
        %681 = vmatpush1.msra.mxu0 0.0
        %682 = vmatprep.subr.mxu0 0.0
        %683 = vmatpush1.msra.mxu0 0.0
        %684 = vmatprep.subr.mxu0 0.0
        %685 = vmatpush1.msra.mxu0 0.0
        %686 = vmatprep.subr.mxu0 0.0
        %687 = vmatpush1.msra.mxu0 0.0
        %688 = vmatprep.subr.mxu0 0.0
        %689 = vmatpush1.msra.mxu0 0.0
        %690 = vmatprep.subr.mxu0 0.0
        %691 = vmatpush1.msra.mxu0 0.0
        %692 = vmatprep.subr.mxu0 0.0
        %693 = vmatpush1.msra.mxu0 0.0
        %694 = vmatprep.subr.mxu0 0.0
        %695 = vmatpush1.msra.mxu0 0.0
        %696 = vmatprep.subr.mxu0 0.0
        %697 = vmatpush1.msra.mxu0 0.0
        %698 = vmatprep.subr.mxu0 0.0
        %699 = vmatpush1.msra.mxu0 0.0
        %700 = vmatprep.subr.mxu0 0.0
        %701 = vmatpush1.msra.mxu0 0.0
        %702 = vmatprep.subr.mxu0 0.0
        %703 = vmatpush1.msra.mxu0 0.0
        %704 = vmatprep.subr.mxu0 0.0
        %705 = vmatpush1.msra.mxu0 0.0
        %706 = vmatprep.subr.mxu0 0.0
        %707 = vmatpush1.msra.mxu0 0.0
        %708 = vmatprep.subr.mxu0 0.0
        %709 = vmatpush1.msra.mxu0 0.0
        %710 = vmatprep.subr.mxu0 0.0
        %711 = vmatpush1.msra.mxu0 0.0
        %712 = vmatprep.subr.mxu0 0.0
        %713 = vmatpush1.msra.mxu0 0.0
        %714 = vmatprep.subr.mxu0 0.0
        %715 = vmatpush1.msra.mxu0 0.0
        %716 = vmatprep.subr.mxu0 0.0
        %717 = vmatpush1.msra.mxu0 0.0
        %718 = vmatprep.subr.mxu0 0.0
        %719 = vmatpush1.msra.mxu0 0.0
        %720 = vmatprep.subr.mxu0 0.0
        %721 = vmatpush1.msra.mxu0 0.0
        %722 = vmatprep.subr.mxu0 0.0
        %723 = vmatpush1.msra.mxu0 0.0
        %724 = vmatprep.mubr.f32.mxu0 0.0
        %725 = vmatmul.mubr.f32.gmra.mrb[0].mxu0 %v651
        %v726 = vpop.f32.mrb[0].mxu0
        %v727 = vadd.f32 0.0, %v726
        %v728 = vpop.f32.mrb[0].mxu0
        %v729 = vadd.f32 0.0, %v728
        %730 = vdwg.mxu0
        %731 = vmatprep.subr.mxu0 0.0
        %732 = vmatpush1.msra.mxu0 %v658
        %733 = vmatprep.subr.mxu0 0.0
        %734 = vmatpush1.msra.mxu0 0.0
        %735 = vmatprep.subr.mxu0 0.0
        %736 = vmatpush1.msra.mxu0 0.0
        %737 = vmatprep.subr.mxu0 0.0
        %738 = vmatpush1.msra.mxu0 0.0
        %739 = vmatprep.subr.mxu0 0.0
        %740 = vmatpush1.msra.mxu0 0.0
        %741 = vmatprep.subr.mxu0 0.0
        %742 = vmatpush1.msra.mxu0 0.0
        %743 = vmatprep.subr.mxu0 0.0
        %744 = vmatpush1.msra.mxu0 0.0
        %745 = vmatprep.subr.mxu0 0.0
        %746 = vmatpush1.msra.mxu0 0.0
        %747 = vmatprep.subr.mxu0 0.0
        %748 = vmatpush1.msra.mxu0 0.0
        %749 = vmatprep.subr.mxu0 0.0
        %750 = vmatpush1.msra.mxu0 0.0
        %751 = vmatprep.subr.mxu0 0.0
        %752 = vmatpush1.msra.mxu0 0.0
        %753 = vmatprep.subr.mxu0 0.0
        %754 = vmatpush1.msra.mxu0 0.0
        %755 = vmatprep.subr.mxu0 0.0
        %756 = vmatpush1.msra.mxu0 0.0
        %757 = vmatprep.subr.mxu0 0.0
        %758 = vmatpush1.msra.mxu0 0.0
        %759 = vmatprep.subr.mxu0 0.0
        %760 = vmatpush1.msra.mxu0 0.0
        %761 = vmatprep.subr.mxu0 0.0
        %762 = vmatpush1.msra.mxu0 0.0
        %763 = vmatprep.subr.mxu0 0.0
        %764 = vmatpush1.msra.mxu0 0.0
        %765 = vmatprep.subr.mxu0 0.0
        %766 = vmatpush1.msra.mxu0 0.0
        %767 = vmatprep.subr.mxu0 0.0
        %768 = vmatpush1.msra.mxu0 0.0
        %769 = vmatprep.subr.mxu0 0.0
        %770 = vmatpush1.msra.mxu0 0.0
        %771 = vmatprep.subr.mxu0 0.0
        %772 = vmatpush1.msra.mxu0 0.0
        %773 = vmatprep.subr.mxu0 0.0
        %774 = vmatpush1.msra.mxu0 0.0
        %775 = vmatprep.subr.mxu0 0.0
        %776 = vmatpush1.msra.mxu0 0.0
        %777 = vmatprep.subr.mxu0 0.0
        %778 = vmatpush1.msra.mxu0 0.0
        %779 = vmatprep.subr.mxu0 0.0
        %780 = vmatpush1.msra.mxu0 0.0
        %781 = vmatprep.subr.mxu0 0.0
        %782 = vmatpush1.msra.mxu0 0.0
        %783 = vmatprep.subr.mxu0 0.0
        %784 = vmatpush1.msra.mxu0 0.0
        %785 = vmatprep.subr.mxu0 0.0
        %786 = vmatpush1.msra.mxu0 0.0
        %787 = vmatprep.subr.mxu0 0.0
        %788 = vmatpush1.msra.mxu0 0.0
        %789 = vmatprep.subr.mxu0 0.0
        %790 = vmatpush1.msra.mxu0 0.0
        %791 = vmatprep.subr.mxu0 0.0
        %792 = vmatpush1.msra.mxu0 0.0
        %793 = vmatprep.subr.mxu0 0.0
        %794 = vmatpush1.msra.mxu0 0.0
        %795 = vmatprep.mubr.f32.mxu0 0.0
        %796 = vmatmul.mubr.f32.gmra.mrb[0].mxu0 %v651
        %v797 = vpop.f32.mrb[0].mxu0
        %v798 = vadd.f32 0.0, %v797
        %v799 = vpop.f32.mrb[0].mxu0
        %800 = vdwg.mxu0
        %v802 = vsel %vm649, %v634, 0
        %v804 = vsel %vm653, %v611, 0
        %v806 = vsel %vm653, %v625, 0
        %v808 = vsel %vm653, %v633, 0
        %810 = vmatprep.subr.mxu0 %v806
        %811 = vmatpush1.msra.mxu0 %v804
        %812 = vmatprep.subr.mxu0 0.0
        %813 = vmatpush1.msra.mxu0 0.0
        %814 = vmatprep.subr.mxu0 0.0
        %815 = vmatpush1.msra.mxu0 0.0
        %816 = vmatprep.subr.mxu0 0.0
        %817 = vmatpush1.msra.mxu0 0.0
        %818 = vmatprep.subr.mxu0 0.0
        %819 = vmatpush1.msra.mxu0 0.0
        %820 = vmatprep.subr.mxu0 0.0
        %821 = vmatpush1.msra.mxu0 0.0
        %822 = vmatprep.subr.mxu0 0.0
        %823 = vmatpush1.msra.mxu0 0.0
        %824 = vmatprep.subr.mxu0 0.0
        %825 = vmatpush1.msra.mxu0 0.0
        %826 = vmatprep.subr.mxu0 0.0
        %827 = vmatpush1.msra.mxu0 0.0
        %828 = vmatprep.subr.mxu0 0.0
        %829 = vmatpush1.msra.mxu0 0.0
        %830 = vmatprep.subr.mxu0 0.0
        %831 = vmatpush1.msra.mxu0 0.0
        %832 = vmatprep.subr.mxu0 0.0
        %833 = vmatpush1.msra.mxu0 0.0
        %834 = vmatprep.subr.mxu0 0.0
        %835 = vmatpush1.msra.mxu0 0.0
        %836 = vmatprep.subr.mxu0 0.0
        %837 = vmatpush1.msra.mxu0 0.0
        %838 = vmatprep.subr.mxu0 0.0
        %839 = vmatpush1.msra.mxu0 0.0
        %840 = vmatprep.subr.mxu0 0.0
        %841 = vmatpush1.msra.mxu0 0.0
        %842 = vmatprep.subr.mxu0 0.0
        %843 = vmatpush1.msra.mxu0 0.0
        %844 = vmatprep.subr.mxu0 0.0
        %845 = vmatpush1.msra.mxu0 0.0
        %846 = vmatprep.subr.mxu0 0.0
        %847 = vmatpush1.msra.mxu0 0.0
        %848 = vmatprep.subr.mxu0 0.0
        %849 = vmatpush1.msra.mxu0 0.0
        %850 = vmatprep.subr.mxu0 0.0
        %851 = vmatpush1.msra.mxu0 0.0
        %852 = vmatprep.subr.mxu0 0.0
        %853 = vmatpush1.msra.mxu0 0.0
        %854 = vmatprep.subr.mxu0 0.0
        %855 = vmatpush1.msra.mxu0 0.0
        %856 = vmatprep.subr.mxu0 0.0
        %857 = vmatpush1.msra.mxu0 0.0
        %858 = vmatprep.subr.mxu0 0.0
        %859 = vmatpush1.msra.mxu0 0.0
        %860 = vmatprep.subr.mxu0 0.0
        %861 = vmatpush1.msra.mxu0 0.0
        %862 = vmatprep.subr.mxu0 0.0
        %863 = vmatpush1.msra.mxu0 0.0
        %864 = vmatprep.subr.mxu0 0.0
        %865 = vmatpush1.msra.mxu0 0.0
        %866 = vmatprep.subr.mxu0 0.0
        %867 = vmatpush1.msra.mxu0 0.0
        %868 = vmatprep.subr.mxu0 0.0
        %869 = vmatpush1.msra.mxu0 0.0
        %870 = vmatprep.subr.mxu0 0.0
        %871 = vmatpush1.msra.mxu0 0.0
        %872 = vmatprep.subr.mxu0 0.0
        %873 = vmatpush1.msra.mxu0 0.0
        %874 = vmatprep.mubr.f32.mxu0 0.0
        %875 = vmatmul.mubr.f32.gmra.mrb[0].mxu0 %v802
        %v876 = vpop.f32.mrb[0].mxu0
        %v877 = vadd.f32 %v727, %v876
        %v878 = vpop.f32.mrb[0].mxu0
        %v879 = vadd.f32 %v729, %v878
        %880 = vdwg.mxu0
        %881 = vmatprep.subr.mxu0 0.0
        %882 = vmatpush1.msra.mxu0 %v808
        %883 = vmatprep.subr.mxu0 0.0
        %884 = vmatpush1.msra.mxu0 0.0
        %885 = vmatprep.subr.mxu0 0.0
        %886 = vmatpush1.msra.mxu0 0.0
        %887 = vmatprep.subr.mxu0 0.0
        %888 = vmatpush1.msra.mxu0 0.0
        %889 = vmatprep.subr.mxu0 0.0
        %890 = vmatpush1.msra.mxu0 0.0
        %891 = vmatprep.subr.mxu0 0.0
        %892 = vmatpush1.msra.mxu0 0.0
        %893 = vmatprep.subr.mxu0 0.0
        %894 = vmatpush1.msra.mxu0 0.0
        %895 = vmatprep.subr.mxu0 0.0
        %896 = vmatpush1.msra.mxu0 0.0
        %897 = vmatprep.subr.mxu0 0.0
        %898 = vmatpush1.msra.mxu0 0.0
        %899 = vmatprep.subr.mxu0 0.0
        %900 = vmatpush1.msra.mxu0 0.0
        %901 = vmatprep.subr.mxu0 0.0
        %902 = vmatpush1.msra.mxu0 0.0
        %903 = vmatprep.subr.mxu0 0.0
        %904 = vmatpush1.msra.mxu0 0.0
        %905 = vmatprep.subr.mxu0 0.0
        %906 = vmatpush1.msra.mxu0 0.0
        %907 = vmatprep.subr.mxu0 0.0
        %908 = vmatpush1.msra.mxu0 0.0
        %909 = vmatprep.subr.mxu0 0.0
        %910 = vmatpush1.msra.mxu0 0.0
        %911 = vmatprep.subr.mxu0 0.0
        %912 = vmatpush1.msra.mxu0 0.0
        %913 = vmatprep.subr.mxu0 0.0
        %914 = vmatpush1.msra.mxu0 0.0
        %915 = vmatprep.subr.mxu0 0.0
        %916 = vmatpush1.msra.mxu0 0.0
        %917 = vmatprep.subr.mxu0 0.0
        %918 = vmatpush1.msra.mxu0 0.0
        %919 = vmatprep.subr.mxu0 0.0
        %920 = vmatpush1.msra.mxu0 0.0
        %921 = vmatprep.subr.mxu0 0.0
        %922 = vmatpush1.msra.mxu0 0.0
        %923 = vmatprep.subr.mxu0 0.0
        %924 = vmatpush1.msra.mxu0 0.0
        %925 = vmatprep.subr.mxu0 0.0
        %926 = vmatpush1.msra.mxu0 0.0
        %927 = vmatprep.subr.mxu0 0.0
        %928 = vmatpush1.msra.mxu0 0.0
        %929 = vmatprep.subr.mxu0 0.0
        %930 = vmatpush1.msra.mxu0 0.0
        %931 = vmatprep.subr.mxu0 0.0
        %932 = vmatpush1.msra.mxu0 0.0
        %933 = vmatprep.subr.mxu0 0.0
        %934 = vmatpush1.msra.mxu0 0.0
        %935 = vmatprep.subr.mxu0 0.0
        %936 = vmatpush1.msra.mxu0 0.0
        %937 = vmatprep.subr.mxu0 0.0
        %938 = vmatpush1.msra.mxu0 0.0
        %939 = vmatprep.subr.mxu0 0.0
        %940 = vmatpush1.msra.mxu0 0.0
        %941 = vmatprep.subr.mxu0 0.0
        %942 = vmatpush1.msra.mxu0 0.0
        %943 = vmatprep.subr.mxu0 0.0
        %944 = vmatpush1.msra.mxu0 0.0
        %945 = vmatprep.mubr.f32.mxu0 0.0
        %946 = vmatmul.mubr.f32.gmra.mrb[0].mxu0 %v802
        %v947 = vpop.f32.mrb[0].mxu0
        %v948 = vadd.f32 %v798, %v947
        %v949 = vpop.f32.mrb[0].mxu0
        %950 = vdwg.mxu0
        %s951 = scalar_lea.vmem %s1, 16
        %v952 = vld [vmem:[%s951] sm:$0xff]
        %953 = vrot.lane.b32.xlu0 %v611, 126
        %v954 = vpop.permute.xlu0 %953
        %955 = vrot.lane.b32.xlu0 %v625, 126
        %v956 = vpop.permute.xlu0 %955
        %957 = vrot.lane.b32.xlu0 %v633, 126
        %v958 = vpop.permute.xlu0 %957
        %v959 = vsel %vm610, %v954, %v956
        %v960 = vsel %vm610, %v956, %v958
        %v962 = vsel %vm649, %v952, 0
        %v964 = vsel %vm653, %v959, 0
        %v966 = vsel %vm653, %v960, 0
        %v968 = vsel %vm653, %v958, 0
        %970 = vmatprep.subr.mxu0 %v966
        %971 = vmatpush1.msra.mxu0 %v964
        %972 = vmatprep.subr.mxu0 0.0
        %973 = vmatpush1.msra.mxu0 0.0
        %974 = vmatprep.subr.mxu0 0.0
        %975 = vmatpush1.msra.mxu0 0.0
        %976 = vmatprep.subr.mxu0 0.0
        %977 = vmatpush1.msra.mxu0 0.0
        %978 = vmatprep.subr.mxu0 0.0
        %979 = vmatpush1.msra.mxu0 0.0
        %980 = vmatprep.subr.mxu0 0.0
        %981 = vmatpush1.msra.mxu0 0.0
        %982 = vmatprep.subr.mxu0 0.0
        %983 = vmatpush1.msra.mxu0 0.0
        %984 = vmatprep.subr.mxu0 0.0
        %985 = vmatpush1.msra.mxu0 0.0
        %986 = vmatprep.subr.mxu0 0.0
        %987 = vmatpush1.msra.mxu0 0.0
        %988 = vmatprep.subr.mxu0 0.0
        %989 = vmatpush1.msra.mxu0 0.0
        %990 = vmatprep.subr.mxu0 0.0
        %991 = vmatpush1.msra.mxu0 0.0
        %992 = vmatprep.subr.mxu0 0.0
        %993 = vmatpush1.msra.mxu0 0.0
        %994 = vmatprep.subr.mxu0 0.0
        %995 = vmatpush1.msra.mxu0 0.0
        %996 = vmatprep.subr.mxu0 0.0
        %997 = vmatpush1.msra.mxu0 0.0
        %998 = vmatprep.subr.mxu0 0.0
        %999 = vmatpush1.msra.mxu0 0.0
        %1000 = vmatprep.subr.mxu0 0.0
        %1001 = vmatpush1.msra.mxu0 0.0
        %1002 = vmatprep.subr.mxu0 0.0
        %1003 = vmatpush1.msra.mxu0 0.0
        %1004 = vmatprep.subr.mxu0 0.0
        %1005 = vmatpush1.msra.mxu0 0.0
        %1006 = vmatprep.subr.mxu0 0.0
        %1007 = vmatpush1.msra.mxu0 0.0
        %1008 = vmatprep.subr.mxu0 0.0
        %1009 = vmatpush1.msra.mxu0 0.0
        %1010 = vmatprep.subr.mxu0 0.0
        %1011 = vmatpush1.msra.mxu0 0.0
        %1012 = vmatprep.subr.mxu0 0.0
        %1013 = vmatpush1.msra.mxu0 0.0
        %1014 = vmatprep.subr.mxu0 0.0
        %1015 = vmatpush1.msra.mxu0 0.0
        %1016 = vmatprep.subr.mxu0 0.0
        %1017 = vmatpush1.msra.mxu0 0.0
        %1018 = vmatprep.subr.mxu0 0.0
        %1019 = vmatpush1.msra.mxu0 0.0
        %1020 = vmatprep.subr.mxu0 0.0
        %1021 = vmatpush1.msra.mxu0 0.0
        %1022 = vmatprep.subr.mxu0 0.0
        %1023 = vmatpush1.msra.mxu0 0.0
        %1024 = vmatprep.subr.mxu0 0.0
        %1025 = vmatpush1.msra.mxu0 0.0
        %1026 = vmatprep.subr.mxu0 0.0
        %1027 = vmatpush1.msra.mxu0 0.0
        %1028 = vmatprep.subr.mxu0 0.0
        %1029 = vmatpush1.msra.mxu0 0.0
        %1030 = vmatprep.subr.mxu0 0.0
        %1031 = vmatpush1.msra.mxu0 0.0
        %1032 = vmatprep.subr.mxu0 0.0
        %1033 = vmatpush1.msra.mxu0 0.0
        %1034 = vmatprep.mubr.f32.mxu0 0.0
        %1035 = vmatmul.mubr.f32.gmra.mrb[0].mxu0 %v962
        %v1036 = vpop.f32.mrb[0].mxu0
        %v1037 = vadd.f32 0.0, %v1036
        %v1038 = vpop.f32.mrb[0].mxu0
        %v1039 = vadd.f32 0.0, %v1038
        %1040 = vdwg.mxu0
        %1041 = vmatprep.subr.mxu0 0.0
        %1042 = vmatpush1.msra.mxu0 %v968
        %1043 = vmatprep.subr.mxu0 0.0
        %1044 = vmatpush1.msra.mxu0 0.0
        %1045 = vmatprep.subr.mxu0 0.0
        %1046 = vmatpush1.msra.mxu0 0.0
        %1047 = vmatprep.subr.mxu0 0.0
        %1048 = vmatpush1.msra.mxu0 0.0
        %1049 = vmatprep.subr.mxu0 0.0
        %1050 = vmatpush1.msra.mxu0 0.0
        %1051 = vmatprep.subr.mxu0 0.0
        %1052 = vmatpush1.msra.mxu0 0.0
        %1053 = vmatprep.subr.mxu0 0.0
        %1054 = vmatpush1.msra.mxu0 0.0
        %1055 = vmatprep.subr.mxu0 0.0
        %1056 = vmatpush1.msra.mxu0 0.0
        %1057 = vmatprep.subr.mxu0 0.0
        %1058 = vmatpush1.msra.mxu0 0.0
        %1059 = vmatprep.subr.mxu0 0.0
        %1060 = vmatpush1.msra.mxu0 0.0
        %1061 = vmatprep.subr.mxu0 0.0
        %1062 = vmatpush1.msra.mxu0 0.0
        %1063 = vmatprep.subr.mxu0 0.0
        %1064 = vmatpush1.msra.mxu0 0.0
        %1065 = vmatprep.subr.mxu0 0.0
        %1066 = vmatpush1.msra.mxu0 0.0
        %1067 = vmatprep.subr.mxu0 0.0
        %1068 = vmatpush1.msra.mxu0 0.0
        %1069 = vmatprep.subr.mxu0 0.0
        %1070 = vmatpush1.msra.mxu0 0.0
        %1071 = vmatprep.subr.mxu0 0.0
        %1072 = vmatpush1.msra.mxu0 0.0
        %1073 = vmatprep.subr.mxu0 0.0
        %1074 = vmatpush1.msra.mxu0 0.0
        %1075 = vmatprep.subr.mxu0 0.0
        %1076 = vmatpush1.msra.mxu0 0.0
        %1077 = vmatprep.subr.mxu0 0.0
        %1078 = vmatpush1.msra.mxu0 0.0
        %1079 = vmatprep.subr.mxu0 0.0
        %1080 = vmatpush1.msra.mxu0 0.0
        %1081 = vmatprep.subr.mxu0 0.0
        %1082 = vmatpush1.msra.mxu0 0.0
        %1083 = vmatprep.subr.mxu0 0.0
        %1084 = vmatpush1.msra.mxu0 0.0
        %1085 = vmatprep.subr.mxu0 0.0
        %1086 = vmatpush1.msra.mxu0 0.0
        %1087 = vmatprep.subr.mxu0 0.0
        %1088 = vmatpush1.msra.mxu0 0.0
        %1089 = vmatprep.subr.mxu0 0.0
        %1090 = vmatpush1.msra.mxu0 0.0
        %1091 = vmatprep.subr.mxu0 0.0
        %1092 = vmatpush1.msra.mxu0 0.0
        %1093 = vmatprep.subr.mxu0 0.0
        %1094 = vmatpush1.msra.mxu0 0.0
        %1095 = vmatprep.subr.mxu0 0.0
        %1096 = vmatpush1.msra.mxu0 0.0
        %1097 = vmatprep.subr.mxu0 0.0
        %1098 = vmatpush1.msra.mxu0 0.0
        %1099 = vmatprep.subr.mxu0 0.0
        %1100 = vmatpush1.msra.mxu0 0.0
        %1101 = vmatprep.subr.mxu0 0.0
        %1102 = vmatpush1.msra.mxu0 0.0
        %1103 = vmatprep.subr.mxu0 0.0
        %1104 = vmatpush1.msra.mxu0 0.0
        %1105 = vmatprep.mubr.f32.mxu0 0.0
        %1106 = vmatmul.mubr.f32.gmra.mrb[0].mxu0 %v962
        %v1107 = vpop.f32.mrb[0].mxu0
        %v1108 = vadd.f32 0.0, %v1107
        %v1109 = vpop.f32.mrb[0].mxu0
        %1110 = vdwg.mxu0
        %v1111 = vadd.f32 %v877, %v1037
        %v1112 = vadd.f32 %v879, %v1039
        %v1113 = vadd.f32 %v948, %v1108
        %s1114 = scalar_lea.vmem %s1, 24
        %v1115 = vld [vmem:[%s1114] sm:$0xff]
        %1116 = vrot.lane.b32.xlu0 %v611, 110
        %v1117 = vpop.permute.xlu0 %1116
        %1118 = vrot.lane.b32.xlu0 %v625, 110
        %v1119 = vpop.permute.xlu0 %1118
        %1120 = vrot.lane.b32.xlu0 %v633, 110
        %v1121 = vpop.permute.xlu0 %1120
        %vm1122 = vcmask 900096
        %v1123 = vsel %vm1122, %v1117, %v1119
        %v1124 = vsel %vm1122, %v1119, %v1121
        %v1126 = vsel %vm649, %v1115, 0
        %v1128 = vsel %vm653, %v1123, 0
        %v1130 = vsel %vm653, %v1124, 0
        %v1132 = vsel %vm653, %v1121, 0
        %1134 = vmatprep.subr.mxu0 %v1130
        %1135 = vmatpush1.msra.mxu0 %v1128
        %1136 = vmatprep.subr.mxu0 0.0
        %1137 = vmatpush1.msra.mxu0 0.0
        %1138 = vmatprep.subr.mxu0 0.0
        %1139 = vmatpush1.msra.mxu0 0.0
        %1140 = vmatprep.subr.mxu0 0.0
        %1141 = vmatpush1.msra.mxu0 0.0
        %1142 = vmatprep.subr.mxu0 0.0
        %1143 = vmatpush1.msra.mxu0 0.0
        %1144 = vmatprep.subr.mxu0 0.0
        %1145 = vmatpush1.msra.mxu0 0.0
        %1146 = vmatprep.subr.mxu0 0.0
        %1147 = vmatpush1.msra.mxu0 0.0
        %1148 = vmatprep.subr.mxu0 0.0
        %1149 = vmatpush1.msra.mxu0 0.0
        %1150 = vmatprep.subr.mxu0 0.0
        %1151 = vmatpush1.msra.mxu0 0.0
        %1152 = vmatprep.subr.mxu0 0.0
        %1153 = vmatpush1.msra.mxu0 0.0
        %1154 = vmatprep.subr.mxu0 0.0
        %1155 = vmatpush1.msra.mxu0 0.0
        %1156 = vmatprep.subr.mxu0 0.0
        %1157 = vmatpush1.msra.mxu0 0.0
        %1158 = vmatprep.subr.mxu0 0.0
        %1159 = vmatpush1.msra.mxu0 0.0
        %1160 = vmatprep.subr.mxu0 0.0
        %1161 = vmatpush1.msra.mxu0 0.0
        %1162 = vmatprep.subr.mxu0 0.0
        %1163 = vmatpush1.msra.mxu0 0.0
        %1164 = vmatprep.subr.mxu0 0.0
        %1165 = vmatpush1.msra.mxu0 0.0
        %1166 = vmatprep.subr.mxu0 0.0
        %1167 = vmatpush1.msra.mxu0 0.0
        %1168 = vmatprep.subr.mxu0 0.0
        %1169 = vmatpush1.msra.mxu0 0.0
        %1170 = vmatprep.subr.mxu0 0.0
        %1171 = vmatpush1.msra.mxu0 0.0
        %1172 = vmatprep.subr.mxu0 0.0
        %1173 = vmatpush1.msra.mxu0 0.0
        %1174 = vmatprep.subr.mxu0 0.0
        %1175 = vmatpush1.msra.mxu0 0.0
        %1176 = vmatprep.subr.mxu0 0.0
        %1177 = vmatpush1.msra.mxu0 0.0
        %1178 = vmatprep.subr.mxu0 0.0
        %1179 = vmatpush1.msra.mxu0 0.0
        %1180 = vmatprep.subr.mxu0 0.0
        %1181 = vmatpush1.msra.mxu0 0.0
        %1182 = vmatprep.subr.mxu0 0.0
        %1183 = vmatpush1.msra.mxu0 0.0
        %1184 = vmatprep.subr.mxu0 0.0
        %1185 = vmatpush1.msra.mxu0 0.0
        %1186 = vmatprep.subr.mxu0 0.0
        %1187 = vmatpush1.msra.mxu0 0.0
        %1188 = vmatprep.subr.mxu0 0.0
        %1189 = vmatpush1.msra.mxu0 0.0
        %1190 = vmatprep.subr.mxu0 0.0
        %1191 = vmatpush1.msra.mxu0 0.0
        %1192 = vmatprep.subr.mxu0 0.0
        %1193 = vmatpush1.msra.mxu0 0.0
        %1194 = vmatprep.subr.mxu0 0.0
        %1195 = vmatpush1.msra.mxu0 0.0
        %1196 = vmatprep.subr.mxu0 0.0
        %1197 = vmatpush1.msra.mxu0 0.0
        %1198 = vmatprep.mubr.f32.mxu0 0.0
        %1199 = vmatmul.mubr.f32.gmra.mrb[0].mxu0 %v1126
        %v1200 = vpop.f32.mrb[0].mxu0
        %v1201 = vadd.f32 0.0, %v1200
        %v1202 = vpop.f32.mrb[0].mxu0
        %v1203 = vadd.f32 0.0, %v1202
        %1204 = vdwg.mxu0
        %1205 = vmatprep.subr.mxu0 0.0
        %1206 = vmatpush1.msra.mxu0 %v1132
        %1207 = vmatprep.subr.mxu0 0.0
        %1208 = vmatpush1.msra.mxu0 0.0
        %1209 = vmatprep.subr.mxu0 0.0
        %1210 = vmatpush1.msra.mxu0 0.0
        %1211 = vmatprep.subr.mxu0 0.0
        %1212 = vmatpush1.msra.mxu0 0.0
        %1213 = vmatprep.subr.mxu0 0.0
        %1214 = vmatpush1.msra.mxu0 0.0
        %1215 = vmatprep.subr.mxu0 0.0
        %1216 = vmatpush1.msra.mxu0 0.0
        %1217 = vmatprep.subr.mxu0 0.0
        %1218 = vmatpush1.msra.mxu0 0.0
        %1219 = vmatprep.subr.mxu0 0.0
        %1220 = vmatpush1.msra.mxu0 0.0
        %1221 = vmatprep.subr.mxu0 0.0
        %1222 = vmatpush1.msra.mxu0 0.0
        %1223 = vmatprep.subr.mxu0 0.0
        %1224 = vmatpush1.msra.mxu0 0.0
        %1225 = vmatprep.subr.mxu0 0.0
        %1226 = vmatpush1.msra.mxu0 0.0
        %1227 = vmatprep.subr.mxu0 0.0
        %1228 = vmatpush1.msra.mxu0 0.0
        %1229 = vmatprep.subr.mxu0 0.0
        %1230 = vmatpush1.msra.mxu0 0.0
        %1231 = vmatprep.subr.mxu0 0.0
        %1232 = vmatpush1.msra.mxu0 0.0
        %1233 = vmatprep.subr.mxu0 0.0
        %1234 = vmatpush1.msra.mxu0 0.0
        %1235 = vmatprep.subr.mxu0 0.0
        %1236 = vmatpush1.msra.mxu0 0.0
        %1237 = vmatprep.subr.mxu0 0.0
        %1238 = vmatpush1.msra.mxu0 0.0
        %1239 = vmatprep.subr.mxu0 0.0
        %1240 = vmatpush1.msra.mxu0 0.0
        %1241 = vmatprep.subr.mxu0 0.0
        %1242 = vmatpush1.msra.mxu0 0.0
        %1243 = vmatprep.subr.mxu0 0.0
        %1244 = vmatpush1.msra.mxu0 0.0
        %1245 = vmatprep.subr.mxu0 0.0
        %1246 = vmatpush1.msra.mxu0 0.0
        %1247 = vmatprep.subr.mxu0 0.0
        %1248 = vmatpush1.msra.mxu0 0.0
        %1249 = vmatprep.subr.mxu0 0.0
        %1250 = vmatpush1.msra.mxu0 0.0
        %1251 = vmatprep.subr.mxu0 0.0
        %1252 = vmatpush1.msra.mxu0 0.0
        %1253 = vmatprep.subr.mxu0 0.0
        %1254 = vmatpush1.msra.mxu0 0.0
        %1255 = vmatprep.subr.mxu0 0.0
        %1256 = vmatpush1.msra.mxu0 0.0
        %1257 = vmatprep.subr.mxu0 0.0
        %1258 = vmatpush1.msra.mxu0 0.0
        %1259 = vmatprep.subr.mxu0 0.0
        %1260 = vmatpush1.msra.mxu0 0.0
        %1261 = vmatprep.subr.mxu0 0.0
        %1262 = vmatpush1.msra.mxu0 0.0
        %1263 = vmatprep.subr.mxu0 0.0
        %1264 = vmatpush1.msra.mxu0 0.0
        %1265 = vmatprep.subr.mxu0 0.0
        %1266 = vmatpush1.msra.mxu0 0.0
        %1267 = vmatprep.subr.mxu0 0.0
        %1268 = vmatpush1.msra.mxu0 0.0
        %1269 = vmatprep.mubr.f32.mxu0 0.0
        %1270 = vmatmul.mubr.f32.gmra.mrb[0].mxu0 %v1126
        %v1271 = vpop.f32.mrb[0].mxu0
        %v1272 = vadd.f32 0.0, %v1271
        %v1273 = vpop.f32.mrb[0].mxu0
        %1274 = vdwg.mxu0
        %v1275 = vadd.f32 %v1111, %v1201
        %v1276 = vadd.f32 %v1112, %v1203
        %v1277 = vadd.f32 %v1113, %v1272
        %s1278 = scalar_lea.vmem %s1, 32
        %v1279 = vld [vmem:[%s1278] sm:$0xff]
        %1280 = vrot.lane.b32.xlu0 %v611, 109
        %v1281 = vpop.permute.xlu0 %1280
        %1282 = vrot.lane.b32.xlu0 %v625, 109
        %v1283 = vpop.permute.xlu0 %1282
        %1284 = vrot.lane.b32.xlu0 %v633, 109
        %v1285 = vpop.permute.xlu0 %1284
        %vm1286 = vcmask 891904
        %v1287 = vsel %vm1286, %v1281, %v1283
        %v1288 = vsel %vm1286, %v1283, %v1285
        %v1290 = vsel %vm649, %v1279, 0
        %v1292 = vsel %vm653, %v1287, 0
        %v1294 = vsel %vm653, %v1288, 0
        %v1296 = vsel %vm653, %v1285, 0
        %1298 = vmatprep.subr.mxu0 %v1294
        %1299 = vmatpush1.msra.mxu0 %v1292
        %1300 = vmatprep.subr.mxu0 0.0
        %1301 = vmatpush1.msra.mxu0 0.0
        %1302 = vmatprep.subr.mxu0 0.0
        %1303 = vmatpush1.msra.mxu0 0.0
        %1304 = vmatprep.subr.mxu0 0.0
        %1305 = vmatpush1.msra.mxu0 0.0
        %1306 = vmatprep.subr.mxu0 0.0
        %1307 = vmatpush1.msra.mxu0 0.0
        %1308 = vmatprep.subr.mxu0 0.0
        %1309 = vmatpush1.msra.mxu0 0.0
        %1310 = vmatprep.subr.mxu0 0.0
        %1311 = vmatpush1.msra.mxu0 0.0
        %1312 = vmatprep.subr.mxu0 0.0
        %1313 = vmatpush1.msra.mxu0 0.0
        %1314 = vmatprep.subr.mxu0 0.0
        %1315 = vmatpush1.msra.mxu0 0.0
        %1316 = vmatprep.subr.mxu0 0.0
        %1317 = vmatpush1.msra.mxu0 0.0
        %1318 = vmatprep.subr.mxu0 0.0
        %1319 = vmatpush1.msra.mxu0 0.0
        %1320 = vmatprep.subr.mxu0 0.0
        %1321 = vmatpush1.msra.mxu0 0.0
        %1322 = vmatprep.subr.mxu0 0.0
        %1323 = vmatpush1.msra.mxu0 0.0
        %1324 = vmatprep.subr.mxu0 0.0
        %1325 = vmatpush1.msra.mxu0 0.0
        %1326 = vmatprep.subr.mxu0 0.0
        %1327 = vmatpush1.msra.mxu0 0.0
        %1328 = vmatprep.subr.mxu0 0.0
        %1329 = vmatpush1.msra.mxu0 0.0
        %1330 = vmatprep.subr.mxu0 0.0
        %1331 = vmatpush1.msra.mxu0 0.0
        %1332 = vmatprep.subr.mxu0 0.0
        %1333 = vmatpush1.msra.mxu0 0.0
        %1334 = vmatprep.subr.mxu0 0.0
        %1335 = vmatpush1.msra.mxu0 0.0
        %1336 = vmatprep.subr.mxu0 0.0
        %1337 = vmatpush1.msra.mxu0 0.0
        %1338 = vmatprep.subr.mxu0 0.0
        %1339 = vmatpush1.msra.mxu0 0.0
        %1340 = vmatprep.subr.mxu0 0.0
        %1341 = vmatpush1.msra.mxu0 0.0
        %1342 = vmatprep.subr.mxu0 0.0
        %1343 = vmatpush1.msra.mxu0 0.0
        %1344 = vmatprep.subr.mxu0 0.0
        %1345 = vmatpush1.msra.mxu0 0.0
        %1346 = vmatprep.subr.mxu0 0.0
        %1347 = vmatpush1.msra.mxu0 0.0
        %1348 = vmatprep.subr.mxu0 0.0
        %1349 = vmatpush1.msra.mxu0 0.0
        %1350 = vmatprep.subr.mxu0 0.0
        %1351 = vmatpush1.msra.mxu0 0.0
        %1352 = vmatprep.subr.mxu0 0.0
        %1353 = vmatpush1.msra.mxu0 0.0
        %1354 = vmatprep.subr.mxu0 0.0
        %1355 = vmatpush1.msra.mxu0 0.0
        %1356 = vmatprep.subr.mxu0 0.0
        %1357 = vmatpush1.msra.mxu0 0.0
        %1358 = vmatprep.subr.mxu0 0.0
        %1359 = vmatpush1.msra.mxu0 0.0
        %1360 = vmatprep.subr.mxu0 0.0
        %1361 = vmatpush1.msra.mxu0 0.0
        %1362 = vmatprep.mubr.f32.mxu0 0.0
        %1363 = vmatmul.mubr.f32.gmra.mrb[0].mxu0 %v1290
        %v1364 = vpop.f32.mrb[0].mxu0
        %v1365 = vadd.f32 0.0, %v1364
        %v1366 = vpop.f32.mrb[0].mxu0
        %v1367 = vadd.f32 0.0, %v1366
        %1368 = vdwg.mxu0
        %1369 = vmatprep.subr.mxu0 0.0
        %1370 = vmatpush1.msra.mxu0 %v1296
        %1371 = vmatprep.subr.mxu0 0.0
        %1372 = vmatpush1.msra.mxu0 0.0
        %1373 = vmatprep.subr.mxu0 0.0
        %1374 = vmatpush1.msra.mxu0 0.0
        %1375 = vmatprep.subr.mxu0 0.0
        %1376 = vmatpush1.msra.mxu0 0.0
        %1377 = vmatprep.subr.mxu0 0.0
        %1378 = vmatpush1.msra.mxu0 0.0
        %1379 = vmatprep.subr.mxu0 0.0
        %1380 = vmatpush1.msra.mxu0 0.0
        %1381 = vmatprep.subr.mxu0 0.0
        %1382 = vmatpush1.msra.mxu0 0.0
        %1383 = vmatprep.subr.mxu0 0.0
        %1384 = vmatpush1.msra.mxu0 0.0
        %1385 = vmatprep.subr.mxu0 0.0
        %1386 = vmatpush1.msra.mxu0 0.0
        %1387 = vmatprep.subr.mxu0 0.0
        %1388 = vmatpush1.msra.mxu0 0.0
        %1389 = vmatprep.subr.mxu0 0.0
        %1390 = vmatpush1.msra.mxu0 0.0
        %1391 = vmatprep.subr.mxu0 0.0
        %1392 = vmatpush1.msra.mxu0 0.0
        %1393 = vmatprep.subr.mxu0 0.0
        %1394 = vmatpush1.msra.mxu0 0.0
        %1395 = vmatprep.subr.mxu0 0.0
        %1396 = vmatpush1.msra.mxu0 0.0
        %1397 = vmatprep.subr.mxu0 0.0
        %1398 = vmatpush1.msra.mxu0 0.0
        %1399 = vmatprep.subr.mxu0 0.0
        %1400 = vmatpush1.msra.mxu0 0.0
        %1401 = vmatprep.subr.mxu0 0.0
        %1402 = vmatpush1.msra.mxu0 0.0
        %1403 = vmatprep.subr.mxu0 0.0
        %1404 = vmatpush1.msra.mxu0 0.0
        %1405 = vmatprep.subr.mxu0 0.0
        %1406 = vmatpush1.msra.mxu0 0.0
        %1407 = vmatprep.subr.mxu0 0.0
        %1408 = vmatpush1.msra.mxu0 0.0
        %1409 = vmatprep.subr.mxu0 0.0
        %1410 = vmatpush1.msra.mxu0 0.0
        %1411 = vmatprep.subr.mxu0 0.0
        %1412 = vmatpush1.msra.mxu0 0.0
        %1413 = vmatprep.subr.mxu0 0.0
        %1414 = vmatpush1.msra.mxu0 0.0
        %1415 = vmatprep.subr.mxu0 0.0
        %1416 = vmatpush1.msra.mxu0 0.0
        %1417 = vmatprep.subr.mxu0 0.0
        %1418 = vmatpush1.msra.mxu0 0.0
        %1419 = vmatprep.subr.mxu0 0.0
        %1420 = vmatpush1.msra.mxu0 0.0
        %1421 = vmatprep.subr.mxu0 0.0
        %1422 = vmatpush1.msra.mxu0 0.0
        %1423 = vmatprep.subr.mxu0 0.0
        %1424 = vmatpush1.msra.mxu0 0.0
        %1425 = vmatprep.subr.mxu0 0.0
        %1426 = vmatpush1.msra.mxu0 0.0
        %1427 = vmatprep.subr.mxu0 0.0
        %1428 = vmatpush1.msra.mxu0 0.0
        %1429 = vmatprep.subr.mxu0 0.0
        %1430 = vmatpush1.msra.mxu0 0.0
        %1431 = vmatprep.subr.mxu0 0.0
        %1432 = vmatpush1.msra.mxu0 0.0
        %1433 = vmatprep.mubr.f32.mxu0 0.0
        %1434 = vmatmul.mubr.f32.gmra.mrb[0].mxu0 %v1290
        %v1435 = vpop.f32.mrb[0].mxu0
        %v1436 = vadd.f32 0.0, %v1435
        %v1437 = vpop.f32.mrb[0].mxu0
        %1438 = vdwg.mxu0
        %v1439 = vadd.f32 %v1275, %v1365
        %v1440 = vadd.f32 %v1276, %v1367
        %v1441 = vadd.f32 %v1277, %v1436
        %s1442 = scalar_lea.vmem %s1, 40
        %v1443 = vld [vmem:[%s1442] sm:$0xff]
        %1444 = vrot.lane.b32.xlu0 %v611, 108
        %v1445 = vpop.permute.xlu0 %1444
        %1446 = vrot.lane.b32.xlu0 %v625, 108
        %v1447 = vpop.permute.xlu0 %1446
        %1448 = vrot.lane.b32.xlu0 %v633, 108
        %v1449 = vpop.permute.xlu0 %1448
        %v1450 = vsel %vm608, %v1445, %v1447
        %v1451 = vsel %vm608, %v1447, %v1449
        %v1453 = vsel %vm649, %v1443, 0
        %v1455 = vsel %vm653, %v1450, 0
        %v1457 = vsel %vm653, %v1451, 0
        %v1459 = vsel %vm653, %v1449, 0
        %1461 = vmatprep.subr.mxu0 %v1457
        %1462 = vmatpush1.msra.mxu0 %v1455
        %1463 = vmatprep.subr.mxu0 0.0
        %1464 = vmatpush1.msra.mxu0 0.0
        %1465 = vmatprep.subr.mxu0 0.0
        %1466 = vmatpush1.msra.mxu0 0.0
        %1467 = vmatprep.subr.mxu0 0.0
        %1468 = vmatpush1.msra.mxu0 0.0
        %1469 = vmatprep.subr.mxu0 0.0
        %1470 = vmatpush1.msra.mxu0 0.0
        %1471 = vmatprep.subr.mxu0 0.0
        %1472 = vmatpush1.msra.mxu0 0.0
        %1473 = vmatprep.subr.mxu0 0.0
        %1474 = vmatpush1.msra.mxu0 0.0
        %1475 = vmatprep.subr.mxu0 0.0
        %1476 = vmatpush1.msra.mxu0 0.0
        %1477 = vmatprep.subr.mxu0 0.0
        %1478 = vmatpush1.msra.mxu0 0.0
        %1479 = vmatprep.subr.mxu0 0.0
        %1480 = vmatpush1.msra.mxu0 0.0
        %1481 = vmatprep.subr.mxu0 0.0
        %1482 = vmatpush1.msra.mxu0 0.0
        %1483 = vmatprep.subr.mxu0 0.0
        %1484 = vmatpush1.msra.mxu0 0.0
        %1485 = vmatprep.subr.mxu0 0.0
        %1486 = vmatpush1.msra.mxu0 0.0
        %1487 = vmatprep.subr.mxu0 0.0
        %1488 = vmatpush1.msra.mxu0 0.0
        %1489 = vmatprep.subr.mxu0 0.0
        %1490 = vmatpush1.msra.mxu0 0.0
        %1491 = vmatprep.subr.mxu0 0.0
        %1492 = vmatpush1.msra.mxu0 0.0
        %1493 = vmatprep.subr.mxu0 0.0
        %1494 = vmatpush1.msra.mxu0 0.0
        %1495 = vmatprep.subr.mxu0 0.0
        %1496 = vmatpush1.msra.mxu0 0.0
        %1497 = vmatprep.subr.mxu0 0.0
        %1498 = vmatpush1.msra.mxu0 0.0
        %1499 = vmatprep.subr.mxu0 0.0
        %1500 = vmatpush1.msra.mxu0 0.0
        %1501 = vmatprep.subr.mxu0 0.0
        %1502 = vmatpush1.msra.mxu0 0.0
        %1503 = vmatprep.subr.mxu0 0.0
        %1504 = vmatpush1.msra.mxu0 0.0
        %1505 = vmatprep.subr.mxu0 0.0
        %1506 = vmatpush1.msra.mxu0 0.0
        %1507 = vmatprep.subr.mxu0 0.0
        %1508 = vmatpush1.msra.mxu0 0.0
        %1509 = vmatprep.subr.mxu0 0.0
        %1510 = vmatpush1.msra.mxu0 0.0
        %1511 = vmatprep.subr.mxu0 0.0
        %1512 = vmatpush1.msra.mxu0 0.0
        %1513 = vmatprep.subr.mxu0 0.0
        %1514 = vmatpush1.msra.mxu0 0.0
        %1515 = vmatprep.subr.mxu0 0.0
        %1516 = vmatpush1.msra.mxu0 0.0
        %1517 = vmatprep.subr.mxu0 0.0
        %1518 = vmatpush1.msra.mxu0 0.0
        %1519 = vmatprep.subr.mxu0 0.0
        %1520 = vmatpush1.msra.mxu0 0.0
        %1521 = vmatprep.subr.mxu0 0.0
        %1522 = vmatpush1.msra.mxu0 0.0
        %1523 = vmatprep.subr.mxu0 0.0
        %1524 = vmatpush1.msra.mxu0 0.0
        %1525 = vmatprep.mubr.f32.mxu0 0.0
        %1526 = vmatmul.mubr.f32.gmra.mrb[0].mxu0 %v1453
        %v1527 = vpop.f32.mrb[0].mxu0
        %v1528 = vadd.f32 0.0, %v1527
        %v1529 = vpop.f32.mrb[0].mxu0
        %v1530 = vadd.f32 0.0, %v1529
        %1531 = vdwg.mxu0
        %1532 = vmatprep.subr.mxu0 0.0
        %1533 = vmatpush1.msra.mxu0 %v1459
        %1534 = vmatprep.subr.mxu0 0.0
        %1535 = vmatpush1.msra.mxu0 0.0
        %1536 = vmatprep.subr.mxu0 0.0
        %1537 = vmatpush1.msra.mxu0 0.0
        %1538 = vmatprep.subr.mxu0 0.0
        %1539 = vmatpush1.msra.mxu0 0.0
        %1540 = vmatprep.subr.mxu0 0.0
        %1541 = vmatpush1.msra.mxu0 0.0
        %1542 = vmatprep.subr.mxu0 0.0
        %1543 = vmatpush1.msra.mxu0 0.0
        %1544 = vmatprep.subr.mxu0 0.0
        %1545 = vmatpush1.msra.mxu0 0.0
        %1546 = vmatprep.subr.mxu0 0.0
        %1547 = vmatpush1.msra.mxu0 0.0
        %1548 = vmatprep.subr.mxu0 0.0
        %1549 = vmatpush1.msra.mxu0 0.0
        %1550 = vmatprep.subr.mxu0 0.0
        %1551 = vmatpush1.msra.mxu0 0.0
        %1552 = vmatprep.subr.mxu0 0.0
        %1553 = vmatpush1.msra.mxu0 0.0
        %1554 = vmatprep.subr.mxu0 0.0
        %1555 = vmatpush1.msra.mxu0 0.0
        %1556 = vmatprep.subr.mxu0 0.0
        %1557 = vmatpush1.msra.mxu0 0.0
        %1558 = vmatprep.subr.mxu0 0.0
        %1559 = vmatpush1.msra.mxu0 0.0
        %1560 = vmatprep.subr.mxu0 0.0
        %1561 = vmatpush1.msra.mxu0 0.0
        %1562 = vmatprep.subr.mxu0 0.0
        %1563 = vmatpush1.msra.mxu0 0.0
        %1564 = vmatprep.subr.mxu0 0.0
        %1565 = vmatpush1.msra.mxu0 0.0
        %1566 = vmatprep.subr.mxu0 0.0
        %1567 = vmatpush1.msra.mxu0 0.0
        %1568 = vmatprep.subr.mxu0 0.0
        %1569 = vmatpush1.msra.mxu0 0.0
        %1570 = vmatprep.subr.mxu0 0.0
        %1571 = vmatpush1.msra.mxu0 0.0
        %1572 = vmatprep.subr.mxu0 0.0
        %1573 = vmatpush1.msra.mxu0 0.0
        %1574 = vmatprep.subr.mxu0 0.0
        %1575 = vmatpush1.msra.mxu0 0.0
        %1576 = vmatprep.subr.mxu0 0.0
        %1577 = vmatpush1.msra.mxu0 0.0
        %1578 = vmatprep.subr.mxu0 0.0
        %1579 = vmatpush1.msra.mxu0 0.0
        %1580 = vmatprep.subr.mxu0 0.0
        %1581 = vmatpush1.msra.mxu0 0.0
        %1582 = vmatprep.subr.mxu0 0.0
        %1583 = vmatpush1.msra.mxu0 0.0
        %1584 = vmatprep.subr.mxu0 0.0
        %1585 = vmatpush1.msra.mxu0 0.0
        %1586 = vmatprep.subr.mxu0 0.0
        %1587 = vmatpush1.msra.mxu0 0.0
        %1588 = vmatprep.subr.mxu0 0.0
        %1589 = vmatpush1.msra.mxu0 0.0
        %1590 = vmatprep.subr.mxu0 0.0
        %1591 = vmatpush1.msra.mxu0 0.0
        %1592 = vmatprep.subr.mxu0 0.0
        %1593 = vmatpush1.msra.mxu0 0.0
        %1594 = vmatprep.subr.mxu0 0.0
        %1595 = vmatpush1.msra.mxu0 0.0
        %1596 = vmatprep.mubr.f32.mxu0 0.0
        %1597 = vmatmul.mubr.f32.gmra.mrb[0].mxu0 %v1453
        %v1598 = vpop.f32.mrb[0].mxu0
        %v1599 = vadd.f32 0.0, %v1598
        %v1600 = vpop.f32.mrb[0].mxu0
        %1601 = vdwg.mxu0
        %v1602 = vadd.f32 %v1439, %v1528
        %v1603 = vadd.f32 %v1440, %v1530
        %v1604 = vadd.f32 %v1441, %v1599
        %s1605 = scalar_lea.vmem %s1, 48
        %v1606 = vld [vmem:[%s1605] sm:$0xff]
        %1607 = vrot.lane.b32.xlu0 %v611, 92
        %v1608 = vpop.permute.xlu0 %1607
        %1609 = vrot.lane.b32.xlu0 %v625, 92
        %v1610 = vpop.permute.xlu0 %1609
        %1611 = vrot.lane.b32.xlu0 %v633, 92
        %v1612 = vpop.permute.xlu0 %1611
        %vm1613 = vcmask 752640
        %v1614 = vsel %vm1613, %v1608, %v1610
        %v1615 = vsel %vm1613, %v1610, %v1612
        %v1617 = vsel %vm649, %v1606, 0
        %v1619 = vsel %vm653, %v1614, 0
        %v1621 = vsel %vm653, %v1615, 0
        %v1623 = vsel %vm653, %v1612, 0
        %1625 = vmatprep.subr.mxu0 %v1621
        %1626 = vmatpush1.msra.mxu0 %v1619
        %1627 = vmatprep.subr.mxu0 0.0
        %1628 = vmatpush1.msra.mxu0 0.0
        %1629 = vmatprep.subr.mxu0 0.0
        %1630 = vmatpush1.msra.mxu0 0.0
        %1631 = vmatprep.subr.mxu0 0.0
        %1632 = vmatpush1.msra.mxu0 0.0
        %1633 = vmatprep.subr.mxu0 0.0
        %1634 = vmatpush1.msra.mxu0 0.0
        %1635 = vmatprep.subr.mxu0 0.0
        %1636 = vmatpush1.msra.mxu0 0.0
        %1637 = vmatprep.subr.mxu0 0.0
        %1638 = vmatpush1.msra.mxu0 0.0
        %1639 = vmatprep.subr.mxu0 0.0
        %1640 = vmatpush1.msra.mxu0 0.0
        %1641 = vmatprep.subr.mxu0 0.0
        %1642 = vmatpush1.msra.mxu0 0.0
        %1643 = vmatprep.subr.mxu0 0.0
        %1644 = vmatpush1.msra.mxu0 0.0
        %1645 = vmatprep.subr.mxu0 0.0
        %1646 = vmatpush1.msra.mxu0 0.0
        %1647 = vmatprep.subr.mxu0 0.0
        %1648 = vmatpush1.msra.mxu0 0.0
        %1649 = vmatprep.subr.mxu0 0.0
        %1650 = vmatpush1.msra.mxu0 0.0
        %1651 = vmatprep.subr.mxu0 0.0
        %1652 = vmatpush1.msra.mxu0 0.0
        %1653 = vmatprep.subr.mxu0 0.0
        %1654 = vmatpush1.msra.mxu0 0.0
        %1655 = vmatprep.subr.mxu0 0.0
        %1656 = vmatpush1.msra.mxu0 0.0
        %1657 = vmatprep.subr.mxu0 0.0
        %1658 = vmatpush1.msra.mxu0 0.0
        %1659 = vmatprep.subr.mxu0 0.0
        %1660 = vmatpush1.msra.mxu0 0.0
        %1661 = vmatprep.subr.mxu0 0.0
        %1662 = vmatpush1.msra.mxu0 0.0
        %1663 = vmatprep.subr.mxu0 0.0
        %1664 = vmatpush1.msra.mxu0 0.0
        %1665 = vmatprep.subr.mxu0 0.0
        %1666 = vmatpush1.msra.mxu0 0.0
        %1667 = vmatprep.subr.mxu0 0.0
        %1668 = vmatpush1.msra.mxu0 0.0
        %1669 = vmatprep.subr.mxu0 0.0
        %1670 = vmatpush1.msra.mxu0 0.0
        %1671 = vmatprep.subr.mxu0 0.0
        %1672 = vmatpush1.msra.mxu0 0.0
        %1673 = vmatprep.subr.mxu0 0.0
        %1674 = vmatpush1.msra.mxu0 0.0
        %1675 = vmatprep.subr.mxu0 0.0
        %1676 = vmatpush1.msra.mxu0 0.0
        %1677 = vmatprep.subr.mxu0 0.0
        %1678 = vmatpush1.msra.mxu0 0.0
        %1679 = vmatprep.subr.mxu0 0.0
        %1680 = vmatpush1.msra.mxu0 0.0
        %1681 = vmatprep.subr.mxu0 0.0
        %1682 = vmatpush1.msra.mxu0 0.0
        %1683 = vmatprep.subr.mxu0 0.0
        %1684 = vmatpush1.msra.mxu0 0.0
        %1685 = vmatprep.subr.mxu0 0.0
        %1686 = vmatpush1.msra.mxu0 0.0
        %1687 = vmatprep.subr.mxu0 0.0
        %1688 = vmatpush1.msra.mxu0 0.0
        %1689 = vmatprep.mubr.f32.mxu0 0.0
        %1690 = vmatmul.mubr.f32.gmra.mrb[0].mxu0 %v1617
        %v1691 = vpop.f32.mrb[0].mxu0
        %v1692 = vadd.f32 0.0, %v1691
        %v1693 = vpop.f32.mrb[0].mxu0
        %v1694 = vadd.f32 0.0, %v1693
        %1695 = vdwg.mxu0
        %1696 = vmatprep.subr.mxu0 0.0
        %1697 = vmatpush1.msra.mxu0 %v1623
        %1698 = vmatprep.subr.mxu0 0.0
        %1699 = vmatpush1.msra.mxu0 0.0
        %1700 = vmatprep.subr.mxu0 0.0
        %1701 = vmatpush1.msra.mxu0 0.0
        %1702 = vmatprep.subr.mxu0 0.0
        %1703 = vmatpush1.msra.mxu0 0.0
        %1704 = vmatprep.subr.mxu0 0.0
        %1705 = vmatpush1.msra.mxu0 0.0
        %1706 = vmatprep.subr.mxu0 0.0
        %1707 = vmatpush1.msra.mxu0 0.0
        %1708 = vmatprep.subr.mxu0 0.0
        %1709 = vmatpush1.msra.mxu0 0.0
        %1710 = vmatprep.subr.mxu0 0.0
        %1711 = vmatpush1.msra.mxu0 0.0
        %1712 = vmatprep.subr.mxu0 0.0
        %1713 = vmatpush1.msra.mxu0 0.0
        %1714 = vmatprep.subr.mxu0 0.0
        %1715 = vmatpush1.msra.mxu0 0.0
        %1716 = vmatprep.subr.mxu0 0.0
        %1717 = vmatpush1.msra.mxu0 0.0
        %1718 = vmatprep.subr.mxu0 0.0
        %1719 = vmatpush1.msra.mxu0 0.0
        %1720 = vmatprep.subr.mxu0 0.0
        %1721 = vmatpush1.msra.mxu0 0.0
        %1722 = vmatprep.subr.mxu0 0.0
        %1723 = vmatpush1.msra.mxu0 0.0
        %1724 = vmatprep.subr.mxu0 0.0
        %1725 = vmatpush1.msra.mxu0 0.0
        %1726 = vmatprep.subr.mxu0 0.0
        %1727 = vmatpush1.msra.mxu0 0.0
        %1728 = vmatprep.subr.mxu0 0.0
        %1729 = vmatpush1.msra.mxu0 0.0
        %1730 = vmatprep.subr.mxu0 0.0
        %1731 = vmatpush1.msra.mxu0 0.0
        %1732 = vmatprep.subr.mxu0 0.0
        %1733 = vmatpush1.msra.mxu0 0.0
        %1734 = vmatprep.subr.mxu0 0.0
        %1735 = vmatpush1.msra.mxu0 0.0
        %1736 = vmatprep.subr.mxu0 0.0
        %1737 = vmatpush1.msra.mxu0 0.0
        %1738 = vmatprep.subr.mxu0 0.0
        %1739 = vmatpush1.msra.mxu0 0.0
        %1740 = vmatprep.subr.mxu0 0.0
        %1741 = vmatpush1.msra.mxu0 0.0
        %1742 = vmatprep.subr.mxu0 0.0
        %1743 = vmatpush1.msra.mxu0 0.0
        %1744 = vmatprep.subr.mxu0 0.0
        %1745 = vmatpush1.msra.mxu0 0.0
        %1746 = vmatprep.subr.mxu0 0.0
        %1747 = vmatpush1.msra.mxu0 0.0
        %1748 = vmatprep.subr.mxu0 0.0
        %1749 = vmatpush1.msra.mxu0 0.0
        %1750 = vmatprep.subr.mxu0 0.0
        %1751 = vmatpush1.msra.mxu0 0.0
        %1752 = vmatprep.subr.mxu0 0.0
        %1753 = vmatpush1.msra.mxu0 0.0
        %1754 = vmatprep.subr.mxu0 0.0
        %1755 = vmatpush1.msra.mxu0 0.0
        %1756 = vmatprep.subr.mxu0 0.0
        %1757 = vmatpush1.msra.mxu0 0.0
        %1758 = vmatprep.subr.mxu0 0.0
        %1759 = vmatpush1.msra.mxu0 0.0
        %1760 = vmatprep.mubr.f32.mxu0 0.0
        %1761 = vmatmul.mubr.f32.gmra.mrb[0].mxu0 %v1617
        %v1762 = vpop.f32.mrb[0].mxu0
        %v1763 = vadd.f32 0.0, %v1762
        %v1764 = vpop.f32.mrb[0].mxu0
        %1765 = vdwg.mxu0
        %v1766 = vadd.f32 %v1602, %v1692
        %v1767 = vadd.f32 %v1603, %v1694
        %v1768 = vadd.f32 %v1604, %v1763
        %s1769 = scalar_lea.vmem %s1, 56
        %v1770 = vld [vmem:[%s1769] sm:$0xff]
        %1771 = vrot.lane.b32.xlu0 %v611, 91
        %v1772 = vpop.permute.xlu0 %1771
        %1773 = vrot.lane.b32.xlu0 %v625, 91
        %v1774 = vpop.permute.xlu0 %1773
        %1775 = vrot.lane.b32.xlu0 %v633, 91
        %v1776 = vpop.permute.xlu0 %1775
        %vm1777 = vcmask 744448
        %v1778 = vsel %vm1777, %v1772, %v1774
        %v1779 = vsel %vm1777, %v1774, %v1776
        %v1781 = vsel %vm649, %v1770, 0
        %v1783 = vsel %vm653, %v1778, 0
        %v1785 = vsel %vm653, %v1779, 0
        %v1787 = vsel %vm653, %v1776, 0
        %1789 = vmatprep.subr.mxu0 %v1785
        %1790 = vmatpush1.msra.mxu0 %v1783
        %1791 = vmatprep.subr.mxu0 0.0
        %1792 = vmatpush1.msra.mxu0 0.0
        %1793 = vmatprep.subr.mxu0 0.0
        %1794 = vmatpush1.msra.mxu0 0.0
        %1795 = vmatprep.subr.mxu0 0.0
        %1796 = vmatpush1.msra.mxu0 0.0
        %1797 = vmatprep.subr.mxu0 0.0
        %1798 = vmatpush1.msra.mxu0 0.0
        %1799 = vmatprep.subr.mxu0 0.0
        %1800 = vmatpush1.msra.mxu0 0.0
        %1801 = vmatprep.subr.mxu0 0.0
        %1802 = vmatpush1.msra.mxu0 0.0
        %1803 = vmatprep.subr.mxu0 0.0
        %1804 = vmatpush1.msra.mxu0 0.0
        %1805 = vmatprep.subr.mxu0 0.0
        %1806 = vmatpush1.msra.mxu0 0.0
        %1807 = vmatprep.subr.mxu0 0.0
        %1808 = vmatpush1.msra.mxu0 0.0
        %1809 = vmatprep.subr.mxu0 0.0
        %1810 = vmatpush1.msra.mxu0 0.0
        %1811 = vmatprep.subr.mxu0 0.0
        %1812 = vmatpush1.msra.mxu0 0.0
        %1813 = vmatprep.subr.mxu0 0.0
        %1814 = vmatpush1.msra.mxu0 0.0
        %1815 = vmatprep.subr.mxu0 0.0
        %1816 = vmatpush1.msra.mxu0 0.0
        %1817 = vmatprep.subr.mxu0 0.0
        %1818 = vmatpush1.msra.mxu0 0.0
        %1819 = vmatprep.subr.mxu0 0.0
        %1820 = vmatpush1.msra.mxu0 0.0
        %1821 = vmatprep.subr.mxu0 0.0
        %1822 = vmatpush1.msra.mxu0 0.0
        %1823 = vmatprep.subr.mxu0 0.0
        %1824 = vmatpush1.msra.mxu0 0.0
        %1825 = vmatprep.subr.mxu0 0.0
        %1826 = vmatpush1.msra.mxu0 0.0
        %1827 = vmatprep.subr.mxu0 0.0
        %1828 = vmatpush1.msra.mxu0 0.0
        %1829 = vmatprep.subr.mxu0 0.0
        %1830 = vmatpush1.msra.mxu0 0.0
        %1831 = vmatprep.subr.mxu0 0.0
        %1832 = vmatpush1.msra.mxu0 0.0
        %1833 = vmatprep.subr.mxu0 0.0
        %1834 = vmatpush1.msra.mxu0 0.0
        %1835 = vmatprep.subr.mxu0 0.0
        %1836 = vmatpush1.msra.mxu0 0.0
        %1837 = vmatprep.subr.mxu0 0.0
        %1838 = vmatpush1.msra.mxu0 0.0
        %1839 = vmatprep.subr.mxu0 0.0
        %1840 = vmatpush1.msra.mxu0 0.0
        %1841 = vmatprep.subr.mxu0 0.0
        %1842 = vmatpush1.msra.mxu0 0.0
        %1843 = vmatprep.subr.mxu0 0.0
        %1844 = vmatpush1.msra.mxu0 0.0
        %1845 = vmatprep.subr.mxu0 0.0
        %1846 = vmatpush1.msra.mxu0 0.0
        %1847 = vmatprep.subr.mxu0 0.0
        %1848 = vmatpush1.msra.mxu0 0.0
        %1849 = vmatprep.subr.mxu0 0.0
        %1850 = vmatpush1.msra.mxu0 0.0
        %1851 = vmatprep.subr.mxu0 0.0
        %1852 = vmatpush1.msra.mxu0 0.0
        %1853 = vmatprep.mubr.f32.mxu0 0.0
        %1854 = vmatmul.mubr.f32.gmra.mrb[0].mxu0 %v1781
        %v1855 = vpop.f32.mrb[0].mxu0
        %v1856 = vadd.f32 0.0, %v1855
        %v1857 = vpop.f32.mrb[0].mxu0
        %v1858 = vadd.f32 0.0, %v1857
        %1859 = vdwg.mxu0
        %1860 = vmatprep.subr.mxu0 0.0
        %1861 = vmatpush1.msra.mxu0 %v1787
        %1862 = vmatprep.subr.mxu0 0.0
        %1863 = vmatpush1.msra.mxu0 0.0
        %1864 = vmatprep.subr.mxu0 0.0
        %1865 = vmatpush1.msra.mxu0 0.0
        %1866 = vmatprep.subr.mxu0 0.0
        %1867 = vmatpush1.msra.mxu0 0.0
        %1868 = vmatprep.subr.mxu0 0.0
        %1869 = vmatpush1.msra.mxu0 0.0
        %1870 = vmatprep.subr.mxu0 0.0
        %1871 = vmatpush1.msra.mxu0 0.0
        %1872 = vmatprep.subr.mxu0 0.0
        %1873 = vmatpush1.msra.mxu0 0.0
        %1874 = vmatprep.subr.mxu0 0.0
        %1875 = vmatpush1.msra.mxu0 0.0
        %1876 = vmatprep.subr.mxu0 0.0
        %1877 = vmatpush1.msra.mxu0 0.0
        %1878 = vmatprep.subr.mxu0 0.0
        %1879 = vmatpush1.msra.mxu0 0.0
        %1880 = vmatprep.subr.mxu0 0.0
        %1881 = vmatpush1.msra.mxu0 0.0
        %1882 = vmatprep.subr.mxu0 0.0
        %1883 = vmatpush1.msra.mxu0 0.0
        %1884 = vmatprep.subr.mxu0 0.0
        %1885 = vmatpush1.msra.mxu0 0.0
        %1886 = vmatprep.subr.mxu0 0.0
        %1887 = vmatpush1.msra.mxu0 0.0
        %1888 = vmatprep.subr.mxu0 0.0
        %1889 = vmatpush1.msra.mxu0 0.0
        %1890 = vmatprep.subr.mxu0 0.0
        %1891 = vmatpush1.msra.mxu0 0.0
        %1892 = vmatprep.subr.mxu0 0.0
        %1893 = vmatpush1.msra.mxu0 0.0
        %1894 = vmatprep.subr.mxu0 0.0
        %1895 = vmatpush1.msra.mxu0 0.0
        %1896 = vmatprep.subr.mxu0 0.0
        %1897 = vmatpush1.msra.mxu0 0.0
        %1898 = vmatprep.subr.mxu0 0.0
        %1899 = vmatpush1.msra.mxu0 0.0
        %1900 = vmatprep.subr.mxu0 0.0
        %1901 = vmatpush1.msra.mxu0 0.0
        %1902 = vmatprep.subr.mxu0 0.0
        %1903 = vmatpush1.msra.mxu0 0.0
        %1904 = vmatprep.subr.mxu0 0.0
        %1905 = vmatpush1.msra.mxu0 0.0
        %1906 = vmatprep.subr.mxu0 0.0
        %1907 = vmatpush1.msra.mxu0 0.0
        %1908 = vmatprep.subr.mxu0 0.0
        %1909 = vmatpush1.msra.mxu0 0.0
        %1910 = vmatprep.subr.mxu0 0.0
        %1911 = vmatpush1.msra.mxu0 0.0
        %1912 = vmatprep.subr.mxu0 0.0
        %1913 = vmatpush1.msra.mxu0 0.0
        %1914 = vmatprep.subr.mxu0 0.0
        %1915 = vmatpush1.msra.mxu0 0.0
        %1916 = vmatprep.subr.mxu0 0.0
        %1917 = vmatpush1.msra.mxu0 0.0
        %1918 = vmatprep.subr.mxu0 0.0
        %1919 = vmatpush1.msra.mxu0 0.0
        %1920 = vmatprep.subr.mxu0 0.0
        %1921 = vmatpush1.msra.mxu0 0.0
        %1922 = vmatprep.subr.mxu0 0.0
        %1923 = vmatpush1.msra.mxu0 0.0
        %1924 = vmatprep.mubr.f32.mxu0 0.0
        %1925 = vmatmul.mubr.f32.gmra.mrb[0].mxu0 %v1781
        %v1926 = vpop.f32.mrb[0].mxu0
        %v1927 = vadd.f32 0.0, %v1926
        %v1928 = vpop.f32.mrb[0].mxu0
        %1929 = vdwg.mxu0
        %v1930 = vadd.f32 %v1766, %v1856
        %v1931 = vadd.f32 %v1767, %v1858
        %v1932 = vadd.f32 %v1768, %v1927
        %s1933 = scalar_lea.vmem %s1, 64
        %v1934 = vld [vmem:[%s1933] sm:$0xff]
        %1935 = vrot.lane.b32.xlu0 %v611, 90
        %v1936 = vpop.permute.xlu0 %1935
        %1937 = vrot.lane.b32.xlu0 %v625, 90
        %v1938 = vpop.permute.xlu0 %1937
        %1939 = vrot.lane.b32.xlu0 %v633, 90
        %v1940 = vpop.permute.xlu0 %1939
        %v1941 = vsel %vm606, %v1936, %v1938
        %v1942 = vsel %vm606, %v1938, %v1940
        %v1944 = vsel %vm649, %v1934, 0
        %v1946 = vsel %vm653, %v1941, 0
        %v1948 = vsel %vm653, %v1942, 0
        %v1950 = vsel %vm653, %v1940, 0
        %1952 = vmatprep.subr.mxu0 %v1948
        %1953 = vmatpush1.msra.mxu0 %v1946
        %1954 = vmatprep.subr.mxu0 0.0
        %1955 = vmatpush1.msra.mxu0 0.0
        %1956 = vmatprep.subr.mxu0 0.0
        %1957 = vmatpush1.msra.mxu0 0.0
        %1958 = vmatprep.subr.mxu0 0.0
        %1959 = vmatpush1.msra.mxu0 0.0
        %1960 = vmatprep.subr.mxu0 0.0
        %1961 = vmatpush1.msra.mxu0 0.0
        %1962 = vmatprep.subr.mxu0 0.0
        %1963 = vmatpush1.msra.mxu0 0.0
        %1964 = vmatprep.subr.mxu0 0.0
        %1965 = vmatpush1.msra.mxu0 0.0
        %1966 = vmatprep.subr.mxu0 0.0
        %1967 = vmatpush1.msra.mxu0 0.0
        %1968 = vmatprep.subr.mxu0 0.0
        %1969 = vmatpush1.msra.mxu0 0.0
        %1970 = vmatprep.subr.mxu0 0.0
        %1971 = vmatpush1.msra.mxu0 0.0
        %1972 = vmatprep.subr.mxu0 0.0
        %1973 = vmatpush1.msra.mxu0 0.0
        %1974 = vmatprep.subr.mxu0 0.0
        %1975 = vmatpush1.msra.mxu0 0.0
        %1976 = vmatprep.subr.mxu0 0.0
        %1977 = vmatpush1.msra.mxu0 0.0
        %1978 = vmatprep.subr.mxu0 0.0
        %1979 = vmatpush1.msra.mxu0 0.0
        %1980 = vmatprep.subr.mxu0 0.0
        %1981 = vmatpush1.msra.mxu0 0.0
        %1982 = vmatprep.subr.mxu0 0.0
        %1983 = vmatpush1.msra.mxu0 0.0
        %1984 = vmatprep.subr.mxu0 0.0
        %1985 = vmatpush1.msra.mxu0 0.0
        %1986 = vmatprep.subr.mxu0 0.0
        %1987 = vmatpush1.msra.mxu0 0.0
        %1988 = vmatprep.subr.mxu0 0.0
        %1989 = vmatpush1.msra.mxu0 0.0
        %1990 = vmatprep.subr.mxu0 0.0
        %1991 = vmatpush1.msra.mxu0 0.0
        %1992 = vmatprep.subr.mxu0 0.0
        %1993 = vmatpush1.msra.mxu0 0.0
        %1994 = vmatprep.subr.mxu0 0.0
        %1995 = vmatpush1.msra.mxu0 0.0
        %1996 = vmatprep.subr.mxu0 0.0
        %1997 = vmatpush1.msra.mxu0 0.0
        %1998 = vmatprep.subr.mxu0 0.0
        %1999 = vmatpush1.msra.mxu0 0.0
        %2000 = vmatprep.subr.mxu0 0.0
        %2001 = vmatpush1.msra.mxu0 0.0
        %2002 = vmatprep.subr.mxu0 0.0
        %2003 = vmatpush1.msra.mxu0 0.0
        %2004 = vmatprep.subr.mxu0 0.0
        %2005 = vmatpush1.msra.mxu0 0.0
        %2006 = vmatprep.subr.mxu0 0.0
        %2007 = vmatpush1.msra.mxu0 0.0
        %2008 = vmatprep.subr.mxu0 0.0
        %2009 = vmatpush1.msra.mxu0 0.0
        %2010 = vmatprep.subr.mxu0 0.0
        %2011 = vmatpush1.msra.mxu0 0.0
        %2012 = vmatprep.subr.mxu0 0.0
        %2013 = vmatpush1.msra.mxu0 0.0
        %2014 = vmatprep.subr.mxu0 0.0
        %2015 = vmatpush1.msra.mxu0 0.0
        %2016 = vmatprep.mubr.f32.mxu0 0.0
        %2017 = vmatmul.mubr.f32.gmra.mrb[0].mxu0 %v1944
        %v2018 = vpop.f32.mrb[0].mxu0
        %v2019 = vadd.f32 0.0, %v2018
        %v2020 = vpop.f32.mrb[0].mxu0
        %v2021 = vadd.f32 0.0, %v2020
        %2022 = vdwg.mxu0
        %2023 = vmatprep.subr.mxu0 0.0
        %2024 = vmatpush1.msra.mxu0 %v1950
        %2025 = vmatprep.subr.mxu0 0.0
        %2026 = vmatpush1.msra.mxu0 0.0
        %2027 = vmatprep.subr.mxu0 0.0
        %2028 = vmatpush1.msra.mxu0 0.0
        %2029 = vmatprep.subr.mxu0 0.0
        %2030 = vmatpush1.msra.mxu0 0.0
        %2031 = vmatprep.subr.mxu0 0.0
        %2032 = vmatpush1.msra.mxu0 0.0
        %2033 = vmatprep.subr.mxu0 0.0
        %2034 = vmatpush1.msra.mxu0 0.0
        %2035 = vmatprep.subr.mxu0 0.0
        %2036 = vmatpush1.msra.mxu0 0.0
        %2037 = vmatprep.subr.mxu0 0.0
        %2038 = vmatpush1.msra.mxu0 0.0
        %2039 = vmatprep.subr.mxu0 0.0
        %2040 = vmatpush1.msra.mxu0 0.0
        %2041 = vmatprep.subr.mxu0 0.0
        %2042 = vmatpush1.msra.mxu0 0.0
        %2043 = vmatprep.subr.mxu0 0.0
        %2044 = vmatpush1.msra.mxu0 0.0
        %2045 = vmatprep.subr.mxu0 0.0
        %2046 = vmatpush1.msra.mxu0 0.0
        %2047 = vmatprep.subr.mxu0 0.0
        %2048 = vmatpush1.msra.mxu0 0.0
        %2049 = vmatprep.subr.mxu0 0.0
        %2050 = vmatpush1.msra.mxu0 0.0
        %2051 = vmatprep.subr.mxu0 0.0
        %2052 = vmatpush1.msra.mxu0 0.0
        %2053 = vmatprep.subr.mxu0 0.0
        %2054 = vmatpush1.msra.mxu0 0.0
        %2055 = vmatprep.subr.mxu0 0.0
        %2056 = vmatpush1.msra.mxu0 0.0
        %2057 = vmatprep.subr.mxu0 0.0
        %2058 = vmatpush1.msra.mxu0 0.0
        %2059 = vmatprep.subr.mxu0 0.0
        %2060 = vmatpush1.msra.mxu0 0.0
        %2061 = vmatprep.subr.mxu0 0.0
        %2062 = vmatpush1.msra.mxu0 0.0
        %2063 = vmatprep.subr.mxu0 0.0
        %2064 = vmatpush1.msra.mxu0 0.0
        %2065 = vmatprep.subr.mxu0 0.0
        %2066 = vmatpush1.msra.mxu0 0.0
        %2067 = vmatprep.subr.mxu0 0.0
        %2068 = vmatpush1.msra.mxu0 0.0
        %2069 = vmatprep.subr.mxu0 0.0
        %2070 = vmatpush1.msra.mxu0 0.0
        %2071 = vmatprep.subr.mxu0 0.0
        %2072 = vmatpush1.msra.mxu0 0.0
        %2073 = vmatprep.subr.mxu0 0.0
        %2074 = vmatpush1.msra.mxu0 0.0
        %2075 = vmatprep.subr.mxu0 0.0
        %2076 = vmatpush1.msra.mxu0 0.0
        %2077 = vmatprep.subr.mxu0 0.0
        %2078 = vmatpush1.msra.mxu0 0.0
        %2079 = vmatprep.subr.mxu0 0.0
        %2080 = vmatpush1.msra.mxu0 0.0
        %2081 = vmatprep.subr.mxu0 0.0
        %2082 = vmatpush1.msra.mxu0 0.0
        %2083 = vmatprep.subr.mxu0 0.0
        %2084 = vmatpush1.msra.mxu0 0.0
        %2085 = vmatprep.subr.mxu0 0.0
        %2086 = vmatpush1.msra.mxu0 0.0
        %2087 = vmatprep.mubr.f32.mxu0 0.0
        %2088 = vmatmul.mubr.f32.gmra.mrb[0].mxu0 %v1944
        %v2089 = vpop.f32.mrb[0].mxu0
        %v2090 = vadd.f32 0.0, %v2089
        %v2091 = vpop.f32.mrb[0].mxu0
        %2092 = vdwg.mxu0
        %v2093 = vadd.f32 %v1930, %v2019
        %v2094 = vadd.f32 %v1931, %v2021
        %v2095 = vadd.f32 %v1932, %v2090
        %2097 = vrot.lane.b32.xlu0 %v2093, 110
        %v2098 = vpop.permute.xlu0 %2097
        %2100 = vrot.lane.b32.xlu0 %v2093, 92
        %v2101 = vpop.permute.xlu0 %2100
        %2103 = vrot.lane.b32.xlu0 %v2093, 74
        %v2104 = vpop.permute.xlu0 %2103
        %2106 = vrot.lane.b32.xlu0 %v2093, 56
        %v2107 = vpop.permute.xlu0 %2106
        %2109 = vrot.lane.b32.xlu0 %v2093, 38
        %v2110 = vpop.permute.xlu0 %2109
        %2112 = vrot.lane.b32.xlu0 %v2093, 20
        %v2113 = vpop.permute.xlu0 %2112
        %2116 = vrot.lane.b32.xlu0 %v2093, 2
        %v2117 = vpop.permute.xlu0 %2116
        %2118 = vrot.lane.b32.xlu0 %v2094, 2
        %v2119 = vpop.permute.xlu0 %2118
        %vm2120 = vcmask 15360
        %v2121 = vsel %vm2120, %v2117, %v2119
        %2123 = vrot.lane.b32.xlu0 %v2094, 112
        %v2124 = vpop.permute.xlu0 %2123
        %2126 = vrot.lane.b32.xlu0 %v2094, 94
        %v2127 = vpop.permute.xlu0 %2126
        %2129 = vrot.lane.b32.xlu0 %v2094, 76
        %v2130 = vpop.permute.xlu0 %2129
        %2132 = vrot.lane.b32.xlu0 %v2094, 58
        %v2133 = vpop.permute.xlu0 %2132
        %2135 = vrot.lane.b32.xlu0 %v2094, 40
        %v2136 = vpop.permute.xlu0 %2135
        %2138 = vrot.lane.b32.xlu0 %v2094, 22
        %v2139 = vpop.permute.xlu0 %2138
        %2142 = vrot.lane.b32.xlu0 %v2094, 4
        %v2143 = vpop.permute.xlu0 %2142
        %2144 = vrot.lane.b32.xlu0 %v2095, 4
        %v2145 = vpop.permute.xlu0 %2144
        %v2146 = vsel %vm649, %v2143, %v2145
        %2148 = vrot.lane.b32.xlu0 %v2095, 114
        %v2149 = vpop.permute.xlu0 %2148
        %v2151 = vcombine.low %v2093, %v2101
        %v2152 = vcombine.high %v2093, %v2101
        %v2154 = vunpack.c.l.s4 1983009808
        %v2155 = vunpack.c.0.s8 %v2154
        %v2156 = vlaneseq
        %v2157 = vshrl.u32 %v2156, 7
        %v2158 = vsub.s32 %v2155, %v2157
        %v2159 = vrot.slane %v2151, %v2158
        %v2161 = vunpack.c.l.s4 1983009808
        %v2162 = vunpack.c.0.s8 %v2161
        %v2163 = vlaneseq
        %v2164 = vshrl.u32 %v2163, 7
        %v2165 = vsub.s32 %v2162, %v2164
        %v2166 = vrot.slane %v2152, %v2165
        %v2167 = vcombine.low %v2098, %v2104
        %v2168 = vcombine.high %v2098, %v2104
        %v2170 = vunpack.c.l.s4 1983009808
        %v2171 = vunpack.c.0.s8 %v2170
        %v2172 = vlaneseq
        %v2173 = vshrl.u32 %v2172, 7
        %v2174 = vsub.s32 %v2171, %v2173
        %v2175 = vrot.slane %v2167, %v2174
        %v2177 = vunpack.c.l.s4 1983009808
        %v2178 = vunpack.c.0.s8 %v2177
        %v2179 = vlaneseq
        %v2180 = vshrl.u32 %v2179, 7
        %v2181 = vsub.s32 %v2178, %v2180
        %v2182 = vrot.slane %v2168, %v2181
        %v2183 = vcombine.low %v2107, %v2113
        %v2184 = vcombine.high %v2107, %v2113
        %v2186 = vunpack.c.l.s4 1983009808
        %v2187 = vunpack.c.0.s8 %v2186
        %v2188 = vlaneseq
        %v2189 = vshrl.u32 %v2188, 7
        %v2190 = vsub.s32 %v2187, %v2189
        %v2191 = vrot.slane %v2183, %v2190
        %v2193 = vunpack.c.l.s4 1983009808
        %v2194 = vunpack.c.0.s8 %v2193
        %v2195 = vlaneseq
        %v2196 = vshrl.u32 %v2195, 7
        %v2197 = vsub.s32 %v2194, %v2196
        %v2198 = vrot.slane %v2184, %v2197
        %v2199 = vcombine.low %v2110, %v2121
        %v2200 = vcombine.high %v2110, %v2121
        %v2202 = vunpack.c.l.s4 1983009808
        %v2203 = vunpack.c.0.s8 %v2202
        %v2204 = vlaneseq
        %v2205 = vshrl.u32 %v2204, 7
        %v2206 = vsub.s32 %v2203, %v2205
        %v2207 = vrot.slane %v2199, %v2206
        %v2209 = vunpack.c.l.s4 1983009808
        %v2210 = vunpack.c.0.s8 %v2209
        %v2211 = vlaneseq
        %v2212 = vshrl.u32 %v2211, 7
        %v2213 = vsub.s32 %v2210, %v2212
        %v2214 = vrot.slane %v2200, %v2213
        %v2215 = vcombine.low %v2159, %v2175
        %v2216 = vcombine.high %v2159, %v2175
        %v2218 = vunpack.c.l.s4 1934713408
        %v2219 = vunpack.c.0.s8 %v2218
        %v2220 = vlaneseq
        %v2221 = vshrl.u32 %v2220, 7
        %v2222 = vsub.s32 %v2219, %v2221
        %v2223 = vrot.slane %v2215, %v2222
        %v2225 = vunpack.c.l.s4 1934713408
        %v2226 = vunpack.c.0.s8 %v2225
        %v2227 = vlaneseq
        %v2228 = vshrl.u32 %v2227, 7
        %v2229 = vsub.s32 %v2226, %v2228
        %v2230 = vrot.slane %v2216, %v2229
        %v2231 = vcombine.low %v2166, %v2182
        %v2232 = vcombine.high %v2166, %v2182
        %v2234 = vunpack.c.l.s4 1934713408
        %v2235 = vunpack.c.0.s8 %v2234
        %v2236 = vlaneseq
        %v2237 = vshrl.u32 %v2236, 7
        %v2238 = vsub.s32 %v2235, %v2237
        %v2239 = vrot.slane %v2231, %v2238
        %v2241 = vunpack.c.l.s4 1934713408
        %v2242 = vunpack.c.0.s8 %v2241
        %v2243 = vlaneseq
        %v2244 = vshrl.u32 %v2243, 7
        %v2245 = vsub.s32 %v2242, %v2244
        %v2246 = vrot.slane %v2232, %v2245
        %v2247 = vcombine.low %v2191, %v2207
        %v2248 = vcombine.high %v2191, %v2207
        %v2250 = vunpack.c.l.s4 1934713408
        %v2251 = vunpack.c.0.s8 %v2250
        %v2252 = vlaneseq
        %v2253 = vshrl.u32 %v2252, 7
        %v2254 = vsub.s32 %v2251, %v2253
        %v2255 = vrot.slane %v2247, %v2254
        %v2257 = vunpack.c.l.s4 1934713408
        %v2258 = vunpack.c.0.s8 %v2257
        %v2259 = vlaneseq
        %v2260 = vshrl.u32 %v2259, 7
        %v2261 = vsub.s32 %v2258, %v2260
        %v2262 = vrot.slane %v2248, %v2261
        %v2263 = vcombine.low %v2198, %v2214
        %v2264 = vcombine.high %v2198, %v2214
        %v2266 = vunpack.c.l.s4 1934713408
        %v2267 = vunpack.c.0.s8 %v2266
        %v2268 = vlaneseq
        %v2269 = vshrl.u32 %v2268, 7
        %v2270 = vsub.s32 %v2267, %v2269
        %v2271 = vrot.slane %v2263, %v2270
        %v2273 = vunpack.c.l.s4 1934713408
        %v2274 = vunpack.c.0.s8 %v2273
        %v2275 = vlaneseq
        %v2276 = vshrl.u32 %v2275, 7
        %v2277 = vsub.s32 %v2274, %v2276
        %v2278 = vrot.slane %v2264, %v2277
        %v2279 = vcombine.low %v2223, %v2255
        %v2280 = vcombine.high %v2223, %v2255
        %v2281 = vcombine.low %v2230, %v2262
        %v2282 = vcombine.high %v2230, %v2262
        %v2283 = vcombine.low %v2239, %v2271
        %v2284 = vcombine.high %v2239, %v2271
        %v2285 = vcombine.low %v2246, %v2278
        %v2286 = vcombine.high %v2246, %v2278
        %v2287 = vcombine.low %v2124, %v2130
        %v2288 = vcombine.high %v2124, %v2130
        %v2290 = vunpack.c.l.s4 1983009808
        %v2291 = vunpack.c.0.s8 %v2290
        %v2292 = vlaneseq
        %v2293 = vshrl.u32 %v2292, 7
        %v2294 = vsub.s32 %v2291, %v2293
        %v2295 = vrot.slane %v2287, %v2294
        %v2297 = vunpack.c.l.s4 1983009808
        %v2298 = vunpack.c.0.s8 %v2297
        %v2299 = vlaneseq
        %v2300 = vshrl.u32 %v2299, 7
        %v2301 = vsub.s32 %v2298, %v2300
        %v2302 = vrot.slane %v2288, %v2301
        %v2303 = vcombine.low %v2127, %v2133
        %v2304 = vcombine.high %v2127, %v2133
        %v2306 = vunpack.c.l.s4 1983009808
        %v2307 = vunpack.c.0.s8 %v2306
        %v2308 = vlaneseq
        %v2309 = vshrl.u32 %v2308, 7
        %v2310 = vsub.s32 %v2307, %v2309
        %v2311 = vrot.slane %v2303, %v2310
        %v2313 = vunpack.c.l.s4 1983009808
        %v2314 = vunpack.c.0.s8 %v2313
        %v2315 = vlaneseq
        %v2316 = vshrl.u32 %v2315, 7
        %v2317 = vsub.s32 %v2314, %v2316
        %v2318 = vrot.slane %v2304, %v2317
        %v2319 = vcombine.low %v2136, %v2146
        %v2320 = vcombine.high %v2136, %v2146
        %v2322 = vunpack.c.l.s4 1983009808
        %v2323 = vunpack.c.0.s8 %v2322
        %v2324 = vlaneseq
        %v2325 = vshrl.u32 %v2324, 7
        %v2326 = vsub.s32 %v2323, %v2325
        %v2327 = vrot.slane %v2319, %v2326
        %v2329 = vunpack.c.l.s4 1983009808
        %v2330 = vunpack.c.0.s8 %v2329
        %v2331 = vlaneseq
        %v2332 = vshrl.u32 %v2331, 7
        %v2333 = vsub.s32 %v2330, %v2332
        %v2334 = vrot.slane %v2320, %v2333
        %v2335 = vcombine.low %v2139, %v2149
        %v2336 = vcombine.high %v2139, %v2149
        %v2338 = vunpack.c.l.s4 1983009808
        %v2339 = vunpack.c.0.s8 %v2338
        %v2340 = vlaneseq
        %v2341 = vshrl.u32 %v2340, 7
        %v2342 = vsub.s32 %v2339, %v2341
        %v2343 = vrot.slane %v2335, %v2342
        %v2345 = vunpack.c.l.s4 1983009808
        %v2346 = vunpack.c.0.s8 %v2345
        %v2347 = vlaneseq
        %v2348 = vshrl.u32 %v2347, 7
        %v2349 = vsub.s32 %v2346, %v2348
        %v2350 = vrot.slane %v2336, %v2349
        %v2351 = vcombine.low %v2295, %v2311
        %v2352 = vcombine.high %v2295, %v2311
        %v2354 = vunpack.c.l.s4 1934713408
        %v2355 = vunpack.c.0.s8 %v2354
        %v2356 = vlaneseq
        %v2357 = vshrl.u32 %v2356, 7
        %v2358 = vsub.s32 %v2355, %v2357
        %v2359 = vrot.slane %v2351, %v2358
        %v2361 = vunpack.c.l.s4 1934713408
        %v2362 = vunpack.c.0.s8 %v2361
        %v2363 = vlaneseq
        %v2364 = vshrl.u32 %v2363, 7
        %v2365 = vsub.s32 %v2362, %v2364
        %v2366 = vrot.slane %v2352, %v2365
        %v2367 = vcombine.low %v2302, %v2318
        %v2368 = vcombine.high %v2302, %v2318
        %v2370 = vunpack.c.l.s4 1934713408
        %v2371 = vunpack.c.0.s8 %v2370
        %v2372 = vlaneseq
        %v2373 = vshrl.u32 %v2372, 7
        %v2374 = vsub.s32 %v2371, %v2373
        %v2375 = vrot.slane %v2367, %v2374
        %v2377 = vunpack.c.l.s4 1934713408
        %v2378 = vunpack.c.0.s8 %v2377
        %v2379 = vlaneseq
        %v2380 = vshrl.u32 %v2379, 7
        %v2381 = vsub.s32 %v2378, %v2380
        %v2382 = vrot.slane %v2368, %v2381
        %v2383 = vcombine.low %v2327, %v2343
        %v2384 = vcombine.high %v2327, %v2343
        %v2386 = vunpack.c.l.s4 1934713408
        %v2387 = vunpack.c.0.s8 %v2386
        %v2388 = vlaneseq
        %v2389 = vshrl.u32 %v2388, 7
        %v2390 = vsub.s32 %v2387, %v2389
        %v2391 = vrot.slane %v2383, %v2390
        %v2393 = vunpack.c.l.s4 1934713408
        %v2394 = vunpack.c.0.s8 %v2393
        %v2395 = vlaneseq
        %v2396 = vshrl.u32 %v2395, 7
        %v2397 = vsub.s32 %v2394, %v2396
        %v2398 = vrot.slane %v2384, %v2397
        %v2399 = vcombine.low %v2334, %v2350
        %v2400 = vcombine.high %v2334, %v2350
        %v2402 = vunpack.c.l.s4 1934713408
        %v2403 = vunpack.c.0.s8 %v2402
        %v2404 = vlaneseq
        %v2405 = vshrl.u32 %v2404, 7
        %v2406 = vsub.s32 %v2403, %v2405
        %v2407 = vrot.slane %v2399, %v2406
        %v2409 = vunpack.c.l.s4 1934713408
        %v2410 = vunpack.c.0.s8 %v2409
        %v2411 = vlaneseq
        %v2412 = vshrl.u32 %v2411, 7
        %v2413 = vsub.s32 %v2410, %v2412
        %v2414 = vrot.slane %v2400, %v2413
        %v2415 = vcombine.low %v2359, %v2391
        %v2416 = vcombine.high %v2359, %v2391
        %v2417 = vcombine.low %v2366, %v2398
        %v2418 = vcombine.high %v2366, %v2398
        %v2419 = vcombine.low %v2375, %v2407
        %v2420 = vcombine.high %v2375, %v2407
        %v2421 = vcombine.low %v2382, %v2414
        %v2422 = vcombine.high %v2382, %v2414
        %v2423 = vcombine.low %v2279, %v2281
        %v2424 = vcombine.high %v2279, %v2281
        %v2426 = vunpack.c.l.s4 1983009808
        %v2427 = vunpack.c.0.s8 %v2426
        %v2428 = vlaneseq
        %v2429 = vshrl.u32 %v2428, 7
        %v2430 = vsub.s32 %v2427, %v2429
        %v2431 = vrot.slane %v2423, %v2430
        %v2433 = vunpack.c.l.s4 1983009808
        %v2434 = vunpack.c.0.s8 %v2433
        %v2435 = vlaneseq
        %v2436 = vshrl.u32 %v2435, 7
        %v2437 = vsub.s32 %v2434, %v2436
        %v2438 = vrot.slane %v2424, %v2437
        %v2439 = vcombine.low %v2280, %v2282
        %v2440 = vcombine.high %v2280, %v2282
        %v2442 = vunpack.c.l.s4 1983009808
        %v2443 = vunpack.c.0.s8 %v2442
        %v2444 = vlaneseq
        %v2445 = vshrl.u32 %v2444, 7
        %v2446 = vsub.s32 %v2443, %v2445
        %v2447 = vrot.slane %v2439, %v2446
        %v2449 = vunpack.c.l.s4 1983009808
        %v2450 = vunpack.c.0.s8 %v2449
        %v2451 = vlaneseq
        %v2452 = vshrl.u32 %v2451, 7
        %v2453 = vsub.s32 %v2450, %v2452
        %v2454 = vrot.slane %v2440, %v2453
        %v2455 = vcombine.low %v2283, %v2285
        %v2456 = vcombine.high %v2283, %v2285
        %v2458 = vunpack.c.l.s4 1983009808
        %v2459 = vunpack.c.0.s8 %v2458
        %v2460 = vlaneseq
        %v2461 = vshrl.u32 %v2460, 7
        %v2462 = vsub.s32 %v2459, %v2461
        %v2463 = vrot.slane %v2455, %v2462
        %v2465 = vunpack.c.l.s4 1983009808
        %v2466 = vunpack.c.0.s8 %v2465
        %v2467 = vlaneseq
        %v2468 = vshrl.u32 %v2467, 7
        %v2469 = vsub.s32 %v2466, %v2468
        %v2470 = vrot.slane %v2456, %v2469
        %v2471 = vcombine.low %v2284, %v2286
        %v2472 = vcombine.high %v2284, %v2286
        %v2474 = vunpack.c.l.s4 1983009808
        %v2475 = vunpack.c.0.s8 %v2474
        %v2476 = vlaneseq
        %v2477 = vshrl.u32 %v2476, 7
        %v2478 = vsub.s32 %v2475, %v2477
        %v2479 = vrot.slane %v2471, %v2478
        %v2481 = vunpack.c.l.s4 1983009808
        %v2482 = vunpack.c.0.s8 %v2481
        %v2483 = vlaneseq
        %v2484 = vshrl.u32 %v2483, 7
        %v2485 = vsub.s32 %v2482, %v2484
        %v2486 = vrot.slane %v2472, %v2485
        %v2487 = vcombine.low %v2431, %v2447
        %v2488 = vcombine.high %v2431, %v2447
        %v2490 = vunpack.c.l.s4 1934713408
        %v2491 = vunpack.c.0.s8 %v2490
        %v2492 = vlaneseq
        %v2493 = vshrl.u32 %v2492, 7
        %v2494 = vsub.s32 %v2491, %v2493
        %v2495 = vrot.slane %v2487, %v2494
        %v2497 = vunpack.c.l.s4 1934713408
        %v2498 = vunpack.c.0.s8 %v2497
        %v2499 = vlaneseq
        %v2500 = vshrl.u32 %v2499, 7
        %v2501 = vsub.s32 %v2498, %v2500
        %v2502 = vrot.slane %v2488, %v2501
        %v2503 = vcombine.low %v2438, %v2454
        %v2504 = vcombine.high %v2438, %v2454
        %v2506 = vunpack.c.l.s4 1934713408
        %v2507 = vunpack.c.0.s8 %v2506
        %v2508 = vlaneseq
        %v2509 = vshrl.u32 %v2508, 7
        %v2510 = vsub.s32 %v2507, %v2509
        %v2511 = vrot.slane %v2503, %v2510
        %v2513 = vunpack.c.l.s4 1934713408
        %v2514 = vunpack.c.0.s8 %v2513
        %v2515 = vlaneseq
        %v2516 = vshrl.u32 %v2515, 7
        %v2517 = vsub.s32 %v2514, %v2516
        %v2518 = vrot.slane %v2504, %v2517
        %v2519 = vcombine.low %v2463, %v2479
        %v2520 = vcombine.high %v2463, %v2479
        %v2522 = vunpack.c.l.s4 1934713408
        %v2523 = vunpack.c.0.s8 %v2522
        %v2524 = vlaneseq
        %v2525 = vshrl.u32 %v2524, 7
        %v2526 = vsub.s32 %v2523, %v2525
        %v2527 = vrot.slane %v2519, %v2526
        %v2529 = vunpack.c.l.s4 1934713408
        %v2530 = vunpack.c.0.s8 %v2529
        %v2531 = vlaneseq
        %v2532 = vshrl.u32 %v2531, 7
        %v2533 = vsub.s32 %v2530, %v2532
        %v2534 = vrot.slane %v2520, %v2533
        %v2535 = vcombine.low %v2470, %v2486
        %v2536 = vcombine.high %v2470, %v2486
        %v2538 = vunpack.c.l.s4 1934713408
        %v2539 = vunpack.c.0.s8 %v2538
        %v2540 = vlaneseq
        %v2541 = vshrl.u32 %v2540, 7
        %v2542 = vsub.s32 %v2539, %v2541
        %v2543 = vrot.slane %v2535, %v2542
        %v2545 = vunpack.c.l.s4 1934713408
        %v2546 = vunpack.c.0.s8 %v2545
        %v2547 = vlaneseq
        %v2548 = vshrl.u32 %v2547, 7
        %v2549 = vsub.s32 %v2546, %v2548
        %v2550 = vrot.slane %v2536, %v2549
        %v2551 = vcombine.low %v2495, %v2527
        %v2552 = vcombine.high %v2495, %v2527
        %v2553 = vcombine.low %v2502, %v2534
        %v2554 = vcombine.high %v2502, %v2534
        %v2555 = vcombine.low %v2511, %v2543
        %v2556 = vcombine.high %v2511, %v2543
        %v2557 = vcombine.low %v2518, %v2550
        %v2558 = vcombine.high %v2518, %v2550
        %v2559 = vcombine.low %v2415, %v2417
        %v2560 = vcombine.high %v2415, %v2417
        %v2562 = vunpack.c.l.s4 1983009808
        %v2563 = vunpack.c.0.s8 %v2562
        %v2564 = vlaneseq
        %v2565 = vshrl.u32 %v2564, 7
        %v2566 = vsub.s32 %v2563, %v2565
        %v2567 = vrot.slane %v2559, %v2566
        %v2569 = vunpack.c.l.s4 1983009808
        %v2570 = vunpack.c.0.s8 %v2569
        %v2571 = vlaneseq
        %v2572 = vshrl.u32 %v2571, 7
        %v2573 = vsub.s32 %v2570, %v2572
        %v2574 = vrot.slane %v2560, %v2573
        %v2575 = vcombine.low %v2416, %v2418
        %v2576 = vcombine.high %v2416, %v2418
        %v2578 = vunpack.c.l.s4 1983009808
        %v2579 = vunpack.c.0.s8 %v2578
        %v2580 = vlaneseq
        %v2581 = vshrl.u32 %v2580, 7
        %v2582 = vsub.s32 %v2579, %v2581
        %v2583 = vrot.slane %v2575, %v2582
        %v2585 = vunpack.c.l.s4 1983009808
        %v2586 = vunpack.c.0.s8 %v2585
        %v2587 = vlaneseq
        %v2588 = vshrl.u32 %v2587, 7
        %v2589 = vsub.s32 %v2586, %v2588
        %v2590 = vrot.slane %v2576, %v2589
        %v2591 = vcombine.low %v2419, %v2421
        %v2592 = vcombine.high %v2419, %v2421
        %v2594 = vunpack.c.l.s4 1983009808
        %v2595 = vunpack.c.0.s8 %v2594
        %v2596 = vlaneseq
        %v2597 = vshrl.u32 %v2596, 7
        %v2598 = vsub.s32 %v2595, %v2597
        %v2599 = vrot.slane %v2591, %v2598
        %v2601 = vunpack.c.l.s4 1983009808
        %v2602 = vunpack.c.0.s8 %v2601
        %v2603 = vlaneseq
        %v2604 = vshrl.u32 %v2603, 7
        %v2605 = vsub.s32 %v2602, %v2604
        %v2606 = vrot.slane %v2592, %v2605
        %v2607 = vcombine.low %v2420, %v2422
        %v2608 = vcombine.high %v2420, %v2422
        %v2610 = vunpack.c.l.s4 1983009808
        %v2611 = vunpack.c.0.s8 %v2610
        %v2612 = vlaneseq
        %v2613 = vshrl.u32 %v2612, 7
        %v2614 = vsub.s32 %v2611, %v2613
        %v2615 = vrot.slane %v2607, %v2614
        %v2617 = vunpack.c.l.s4 1983009808
        %v2618 = vunpack.c.0.s8 %v2617
        %v2619 = vlaneseq
        %v2620 = vshrl.u32 %v2619, 7
        %v2621 = vsub.s32 %v2618, %v2620
        %v2622 = vrot.slane %v2608, %v2621
        %v2623 = vcombine.low %v2567, %v2583
        %v2624 = vcombine.high %v2567, %v2583
        %v2626 = vunpack.c.l.s4 1934713408
        %v2627 = vunpack.c.0.s8 %v2626
        %v2628 = vlaneseq
        %v2629 = vshrl.u32 %v2628, 7
        %v2630 = vsub.s32 %v2627, %v2629
        %v2631 = vrot.slane %v2623, %v2630
        %v2633 = vunpack.c.l.s4 1934713408
        %v2634 = vunpack.c.0.s8 %v2633
        %v2635 = vlaneseq
        %v2636 = vshrl.u32 %v2635, 7
        %v2637 = vsub.s32 %v2634, %v2636
        %v2638 = vrot.slane %v2624, %v2637
        %v2639 = vcombine.low %v2574, %v2590
        %v2640 = vcombine.high %v2574, %v2590
        %v2642 = vunpack.c.l.s4 1934713408
        %v2643 = vunpack.c.0.s8 %v2642
        %v2644 = vlaneseq
        %v2645 = vshrl.u32 %v2644, 7
        %v2646 = vsub.s32 %v2643, %v2645
        %v2647 = vrot.slane %v2639, %v2646
        %v2649 = vunpack.c.l.s4 1934713408
        %v2650 = vunpack.c.0.s8 %v2649
        %v2651 = vlaneseq
        %v2652 = vshrl.u32 %v2651, 7
        %v2653 = vsub.s32 %v2650, %v2652
        %v2654 = vrot.slane %v2640, %v2653
        %v2655 = vcombine.low %v2599, %v2615
        %v2656 = vcombine.high %v2599, %v2615
        %v2658 = vunpack.c.l.s4 1934713408
        %v2659 = vunpack.c.0.s8 %v2658
        %v2660 = vlaneseq
        %v2661 = vshrl.u32 %v2660, 7
        %v2662 = vsub.s32 %v2659, %v2661
        %v2663 = vrot.slane %v2655, %v2662
        %v2665 = vunpack.c.l.s4 1934713408
        %v2666 = vunpack.c.0.s8 %v2665
        %v2667 = vlaneseq
        %v2668 = vshrl.u32 %v2667, 7
        %v2669 = vsub.s32 %v2666, %v2668
        %v2670 = vrot.slane %v2656, %v2669
        %v2671 = vcombine.low %v2606, %v2622
        %v2672 = vcombine.high %v2606, %v2622
        %v2674 = vunpack.c.l.s4 1934713408
        %v2675 = vunpack.c.0.s8 %v2674
        %v2676 = vlaneseq
        %v2677 = vshrl.u32 %v2676, 7
        %v2678 = vsub.s32 %v2675, %v2677
        %v2679 = vrot.slane %v2671, %v2678
        %v2681 = vunpack.c.l.s4 1934713408
        %v2682 = vunpack.c.0.s8 %v2681
        %v2683 = vlaneseq
        %v2684 = vshrl.u32 %v2683, 7
        %v2685 = vsub.s32 %v2682, %v2684
        %v2686 = vrot.slane %v2672, %v2685
        %v2687 = vcombine.low %v2631, %v2663
        %v2688 = vcombine.high %v2631, %v2663
        %v2689 = vcombine.low %v2638, %v2670
        %v2690 = vcombine.high %v2638, %v2670
        %v2691 = vcombine.low %v2647, %v2679
        %v2692 = vcombine.high %v2647, %v2679
        %v2693 = vcombine.low %v2654, %v2686
        %v2694 = vcombine.high %v2654, %v2686
        %2696 = vrot.lane.b32.xlu0 %v2552, 16
        %v2697 = vpop.permute.xlu0 %2696
        %2700 = vrot.lane.b32.xlu0 %v2553, 32
        %v2701 = vpop.permute.xlu0 %2700
        %2704 = vrot.lane.b32.xlu0 %v2554, 48
        %v2705 = vpop.permute.xlu0 %2704
        %2708 = vrot.lane.b32.xlu0 %v2555, 64
        %v2709 = vpop.permute.xlu0 %2708
        %2712 = vrot.lane.b32.xlu0 %v2556, 80
        %v2713 = vpop.permute.xlu0 %2712
        %2716 = vrot.lane.b32.xlu0 %v2557, 96
        %v2717 = vpop.permute.xlu0 %2716
        %2720 = vrot.lane.b32.xlu0 %v2558, 112
        %v2721 = vpop.permute.xlu0 %2720
        %2724 = vrot.lane.b32.xlu0 %v2688, 16
        %v2725 = vpop.permute.xlu0 %2724
        %2728 = vrot.lane.b32.xlu0 %v2689, 32
        %v2729 = vpop.permute.xlu0 %2728
        %2732 = vrot.lane.b32.xlu0 %v2690, 48
        %v2733 = vpop.permute.xlu0 %2732
        %2736 = vrot.lane.b32.xlu0 %v2691, 64
        %v2737 = vpop.permute.xlu0 %2736
        %2740 = vrot.lane.b32.xlu0 %v2692, 80
        %v2741 = vpop.permute.xlu0 %2740
        %2744 = vrot.lane.b32.xlu0 %v2693, 96
        %v2745 = vpop.permute.xlu0 %2744
        %2748 = vrot.lane.b32.xlu0 %v2694, 112
        %v2749 = vpop.permute.xlu0 %2748
        %v2751 = vsel %vm612, %v2551, %v2697
        %v2752 = vsel %vm628, %v2751, %v2701
        %vm2753 = vcmask 392192
        %v2754 = vsel %vm2753, %v2752, %v2705
        %vm2755 = vcmask 523264
        %v2756 = vsel %vm2755, %v2754, %v2709
        %vm2757 = vcmask 654336
        %v2758 = vsel %vm2757, %v2756, %v2713
        %vm2759 = vcmask 785408
        %v2760 = vsel %vm2759, %v2758, %v2717
        %vm2761 = vcmask 916480
        %v2762 = vsel %vm2761, %v2760, %v2721
        %v2763 = vsel %vm612, %v2687, %v2725
        %v2764 = vsel %vm628, %v2763, %v2729
        %v2765 = vsel %vm2753, %v2764, %v2733
        %v2766 = vsel %vm2755, %v2765, %v2737
        %v2767 = vsel %vm2757, %v2766, %v2741
        %v2768 = vsel %vm2759, %v2767, %v2745
        %v2769 = vsel %vm2761, %v2768, %v2749
        %v2770 = vld [vmem:[%s2] sm:$0xff]
        %2772 = vset.pattern.permute.xlu0 0
        %2773 = vperm.xlu0 %2772, %v2770
        %v2774 = vpop.permute.xlu0 %2773
        %v2776 = vadd.f32 %v2762, %v2774
        %v2777 = vadd.f32 %v2769, %v2774
        %vm2778 = vcmp.gt.f32.partialorder %v2776, 0.0
        %vm2779 = vcmp.gt.f32.partialorder %v2777, 0.0
        %v2780 = vmul.f32 %v2776, 0.1
        %v2781 = vmul.f32 %v2777, 0.1
        %v2782 = vsel %vm2778, %v2776, %v2780
        %v2783 = vsel %vm2779, %v2777, %v2781
        %2784 = vst [vmem:[%s188] sm:$0xff] %v2782
        %2785 = vst [vmem:[%s188 + $0x8] sm:$0xff] %v2783
        %s2786 = sand.u32 %s96, 1
        %s2787 = scalar_lea.sflag [#allocation4], %s2786
        %s2788 = sand.u32 %s96, 1
        %s2789 = smul.addr %s2788, 16
        %s2790 = scalar_lea.vmem [#allocation5], %s2789
        // Predicated region
        $region37: #{tpu_custom_call.1} parent=31 // pred_check
          %p2791 = pneg %p106
        $region38: #{tpu_custom_call.1} parent=31 // pred_check_branch
          %2793 = sbr.rel (%p2791) target = $region40
        $region39: #{tpu_custom_call.1} parent=31 // pred_region
          %s2795 = ssub.s32 256, 256
          %2796 = vsyncadd %s2787, %s2795
          %s2797 = smul.addr %s20, 2
          %s2798 = smul.addr %s2797, 128
          %s2799 = scalar_lea.hbm %s3, %s2798
          %s2801 = sshll.u32 %s2790, 4
          %s2802 = int_to_ptr.vmem [resolvable:$true] %s2801
          %2804 = dma.vmem_to_hbm [thread:$0]  %s2802, 256, %s2799, %s2787
        $region40: #{tpu_custom_call.1} parent=31 // pred_fallthru
          _
      $region32: #{tpu_custom_call.1} parent=5 // pred_fallthru
        _
      %p2805 = scmp.le.s32.totalorder 2, %s15
      // Predicated region
      $region41: #{tpu_custom_call.1} parent=5 // pred_check
        %p2806 = pneg %p2805
      $region42: #{tpu_custom_call.1} parent=5 // pred_check_branch
        %2808 = sbr.rel (%p2806) target = $region44
      $region43: #{tpu_custom_call.1} parent=5 // pred_region
        %s2809 = ssub.s32 %s15, 2
        // Predicated region
        $region45: #{tpu_custom_call.1} parent=43 // pred_check
          %p2810 = pneg %p112
        $region46: #{tpu_custom_call.1} parent=43 // pred_check_branch
          %2812 = sbr.rel (%p2810) target = $region48
        $region47: #{tpu_custom_call.1} parent=43 // pred_region
          %s2813 = sand.u32 %s97, 1
          %s2814 = scalar_lea.sflag [#allocation4], %s2813
          %s2815 = sand.u32 %s97, 1
          %s2816 = smul.addr %s2815, 16
          %s2817 = scalar_lea.vmem [#allocation5], %s2816
          %2818 = dma.done %s2814, 256
        $region48: #{tpu_custom_call.1} parent=43 // pred_fallthru
          _
      $region44: #{tpu_custom_call.1} parent=5 // pred_fallthru
        _
    $region6: #{tpu_custom_call.1} parent=1 // loop_footer
      %s19 = sadd.s32 1, %s15
    $region7: #{tpu_custom_call.1} parent=1 // loop_footer_branch
      %14 = sbr.rel target = $region3
    $region8: #{tpu_custom_call.1} parent=1 // loop_exit
      _
    %2819 = vsyncpa [#allocation3], 1
    %s2820 = scalar_lea.sflag [#allocation3], 1
    %2821 = vsyncpa %s2820, 1
    %2822 = vsyncpa [#allocation4], 1
    %s2823 = scalar_lea.sflag [#allocation4], 1
    %2824 = vsyncpa %s2823, 1

</llo_original>
